<compile_context>
chip_gen: v7x
topology: tpu7x:2x2x1
jax: 0.10.0
libtpu: 0.0.40
codegen_flags: <defaults>
</compile_context>

<pallas_src>
import jax
import jax.numpy as jnp
from jax import lax
from jax.experimental import pallas as pl
from jax.experimental.pallas import tpu as pltpu


def down_kernel(xt_ref, xm_ref, xb_ref, w1_ref, w2_ref, wd_ref,
                s1_ref, b1_ref, s2_ref, b2_ref, bd_ref, o_ref):
    """One (image, pooled-row tile) per grid step.

    xt_ref: (2,  2, W, 2*Cin) bf16  halo above the tile (garbage at image top)
    xm_ref: (TH, 2, W, 2*Cin) bf16  the tile's input rows (pool-phase view)
    xb_ref: (2,  2, W, 2*Cin) bf16  halo below the tile (garbage at image bottom)
    w1_ref: (3, 3*Cin,  Cout) bf16  conv1 weights, (ky)(kx,cin) layout
    w2_ref: (3, 3*Cout, Cout) bf16  conv2 weights
    wd_ref: (Cin, Cout)       bf16  1x1 downsample weights with BN_d scale folded
    s*/b* : (1, C) f32              folded BatchNorm scale / bias
    o_ref : (TH*W, Cout) f32        this tile's output rows, flattened
    """
    r = pl.program_id(1)
    num_r = pl.num_programs(1)
    TH = xm_ref.shape[0]
    W = xm_ref.shape[2]
    Cin = xm_ref.shape[3] // 2
    Cout = o_ref.shape[-1]

    # --- MaxPool2d(2): row phase is dim 1, column phase is the lane half ---
    def pool(ref):
        v = ref[...].astype(jnp.float32)                 # (T, 2, W, 2*Cin)
        v = jnp.maximum(v[:, 0], v[:, 1])                # (T, W, 2*Cin)
        return jnp.maximum(v[..., :Cin], v[..., Cin:])   # (T, W, Cin)

    xp_t = pool(xt_ref)                                  # (2,  W, Cin)
    xp_m = pool(xm_ref)                                  # (TH, W, Cin)
    xp_b = pool(xb_ref)                                  # (2,  W, Cin)

    # --- BN1 + ReLU; halo rows outside the image become the conv's zero pad ---
    s1 = s1_ref[...]
    b1 = b1_ref[...]
    top_ok = (r > 0).astype(jnp.float32)
    bot_ok = (r < num_r - 1).astype(jnp.float32)
    h_m = jnp.maximum(xp_m * s1 + b1, 0.0)
    h_t = jnp.maximum(xp_t * s1 + b1, 0.0) * top_ok
    h_b = jnp.maximum(xp_b * s1 + b1, 0.0) * bot_ok
    h = jnp.concatenate([h_t, h_m, h_b], axis=0)         # (TH+4, W, Cin) f32

    # --- column edge masks, hoisted and reused by both convs ---
    col = lax.broadcasted_iota(jnp.int32, (1, W, 1), 1)
    not_first = col != 0
    not_last = col != (W - 1)

    def conv3x3(hin, w_ref):
        """'SAME'-in-W / valid-in-rows 3x3 conv as 3 accumulated matmuls (K=3*C)."""
        rows = hin.shape[0] - 2
        c = hin.shape[-1]
        acc = jnp.zeros((rows * W, w_ref.shape[-1]), jnp.float32)
        for ky in range(3):
            slab = hin[ky:ky + rows]                                  # rows y+ky-1
            left = jnp.where(not_first, pltpu.roll(slab, 1, axis=1), 0.0)
            right = jnp.where(not_last, pltpu.roll(slab, W - 1, axis=1), 0.0)
            taps = jnp.concatenate([left, slab, right], axis=-1)      # (rows, W, 3c)
            acc = acc + jnp.dot(
                taps.reshape(rows * W, 3 * c).astype(jnp.bfloat16),
                w_ref[ky], preferred_element_type=jnp.float32)
        return acc                                                    # (rows*W, Cout)

    # --- main branch: conv1 -> BN2 + ReLU -> conv2 ---
    h1 = conv3x3(h, w1_ref).reshape(TH + 2, W, Cout)
    h1 = jnp.maximum(h1 * s2_ref[...] + b2_ref[...], 0.0)
    # zero the h1 rows that fall outside the image (conv2's zero padding)
    row = lax.broadcasted_iota(jnp.int32, (TH + 2, 1, 1), 0)
    keep = ((row > 0) | (r > 0)) & ((row < TH + 1) | (r < num_r - 1))
    h1 = jnp.where(keep, h1, 0.0)
    main = conv3x3(h1, w2_ref)                                        # (TH*W, Cout)

    # --- downsample branch: 1x1 conv (BN_d scale folded) + BN_d bias ---
    down = jnp.dot(xp_m.reshape(TH * W, Cin).astype(jnp.bfloat16), wd_ref[...],
                   preferred_element_type=jnp.float32) + bd_ref[...]

    o_ref[...] = (main + down).astype(o_ref.dtype)


def _fold_bn(gamma, beta, mean, var, eps=1e-5):
    scale = gamma / jnp.sqrt(var + eps)
    bias = beta - mean * scale
    return (scale.reshape(1, -1).astype(jnp.float32),
            bias.reshape(1, -1).astype(jnp.float32))


def _pick_row_tile(H, W, Cin, Cout, budget_bytes=24 * 1024 * 1024):
    """Largest even row tile (dividing H) whose working set fits the budget."""
    cands = [t for t in range(2, H + 1, 2) if H % t == 0 and (t * W) % 8 == 0]
    assert cands, "pooled height must be even with an even row tile (tile*W % 8 == 0)"
    best = cands[0]
    for t in cands:
        x_tile = 2 * 2 * (t + 4) * 2 * W * 2 * Cin                  # bf16 input, 2 bufs
        acts = 4 * W * ((t + 4) * Cin + (t + 2) * Cout + 2 * t * Cout)
        taps = 4 * W * 3 * max((t + 2) * Cin, t * Cout)             # per-ky im2col slab
        out_t = 2 * 4 * t * W * Cout                                # f32 output, 2 bufs
        if x_tile + acts + taps + out_t <= budget_bytes:
            best = t
    return best


def down_forward(x_nchw, params, *, row_tile=None):
    """Down(pooling='Max') forward. Input/output are NCHW (PyTorch convention)."""
    x = jnp.transpose(x_nchw, (0, 2, 3, 1))                         # NCHW -> NHWC
    N, H2, W2, Cin = x.shape
    assert H2 % 2 == 0 and W2 % 2 == 0
    H, W = H2 // 2, W2 // 2
    assert H % 2 == 0, "pooled height must be even for the 2-row halo blocks"
    Cout = params['w1'].shape[-1]

    TH = _pick_row_tile(H, W, Cin, Cout) if row_tile is None else row_tile
    assert H % TH == 0 and TH % 2 == 0 and (TH * W) % 8 == 0, (H, W, TH)
    R = H // TH

    # bf16 input halves HBM traffic; the free row-major reshape exposes the
    # 2x2 pool phases (row phase = dim 1, column phase = lane half).
    xr = x.astype(jnp.bfloat16).reshape(N * H, 2, W, 2 * Cin)

    s1, b1 = _fold_bn(params['bn1_g'], params['bn1_b'], params['bn1_m'], params['bn1_v'])
    s2, b2 = _fold_bn(params['bn2_g'], params['bn2_b'], params['bn2_m'], params['bn2_v'])
    sd, bd = _fold_bn(params['bnd_g'], params['bnd_b'], params['bnd_m'], params['bnd_v'])

    w1 = params['w1'].reshape(3, 3 * Cin, Cout).astype(jnp.bfloat16)   # (ky)(kx,cin)
    w2 = params['w2'].reshape(3, 3 * Cout, Cout).astype(jnp.bfloat16)
    wd = (params['wd'] * sd).astype(jnp.bfloat16)      # fold BN_d scale into 1x1 weights

    main_spec = pl.BlockSpec((TH, 2, W, 2 * Cin), lambda n, r: (n * R + r, 0, 0, 0))
    # 2-pooled-row halo views of the same input; clamped at the array ends
    # (boundary content is zeroed in-kernel, so clamped data is never used).
    top_spec = pl.BlockSpec(
        (2, 2, W, 2 * Cin),
        lambda n, r: (jnp.maximum(n * (H // 2) + r * (TH // 2) - 1, 0), 0, 0, 0))
    bot_spec = pl.BlockSpec(
        (2, 2, W, 2 * Cin),
        lambda n, r: (jnp.minimum(n * (H // 2) + (r + 1) * (TH // 2),
                                  N * (H // 2) - 1), 0, 0, 0))
    bn_spec = lambda c: pl.BlockSpec((1, c), lambda n, r: (0, 0))

    out_flat = pl.pallas_call(
        down_kernel,
        grid=(N, R),
        out_shape=jax.ShapeDtypeStruct((N * H * W, Cout), jnp.float32),
        in_specs=[
            top_spec, main_spec, bot_spec,
            pl.BlockSpec((3, 3 * Cin, Cout), lambda n, r: (0, 0, 0)),
            pl.BlockSpec((3, 3 * Cout, Cout), lambda n, r: (0, 0, 0)),
            pl.BlockSpec((Cin, Cout), lambda n, r: (0, 0)),
            bn_spec(Cin), bn_spec(Cin), bn_spec(Cout), bn_spec(Cout), bn_spec(Cout),
        ],
        out_specs=pl.BlockSpec((TH * W, Cout), lambda n, r: (n * R + r, 0)),
        compiler_params=pltpu.CompilerParams(
            dimension_semantics=("parallel", "parallel"),
            vmem_limit_bytes=48 * 1024 * 1024),
    )(xr, xr, xr, w1, w2, wd, s1, b1, s2, b2, bd)

    out = out_flat.reshape(N, H, W, Cout)
    return jnp.transpose(out, (0, 3, 1, 2))                         # NHWC -> NCHW


def ref_forward(x_nchw, params):
    """Plain-JAX f32 reference (eval-mode BN) for verification."""
    x = jnp.transpose(x_nchw, (0, 2, 3, 1)).astype(jnp.float32)
    N, H2, W2, Cin = x.shape
    Cout = params['w1'].shape[-1]
    xp = jnp.max(x.reshape(N, H2 // 2, 2, W2 // 2, 2, Cin), axis=(2, 4))

    def bn(v, g, b, m, var):
        return (v - m) / jnp.sqrt(var + 1e-5) * g + b

    dn = ('NHWC', 'HWIO', 'NHWC')
    h = jax.nn.relu(bn(xp, params['bn1_g'], params['bn1_b'], params['bn1_m'], params['bn1_v']))
    h = lax.conv_general_dilated(h, params['w1'], (1, 1), 'SAME', dimension_numbers=dn)
    h = jax.nn.relu(bn(h, params['bn2_g'], params['bn2_b'], params['bn2_m'], params['bn2_v']))
    h = lax.conv_general_dilated(h, params['w2'], (1, 1), 'SAME', dimension_numbers=dn)
    d = lax.conv_general_dilated(xp, params['wd'].reshape(1, 1, Cin, Cout), (1, 1), 'SAME',
                                 dimension_numbers=dn)
    d = bn(d, params['bnd_g'], params['bnd_b'], params['bnd_m'], params['bnd_v'])
    return jnp.transpose(h + d, (0, 3, 1, 2))


def make_params(key, cin, cout):
    ks = jax.random.split(key, 16)

    def bn_params(k, c):
        k0, k1, k2, k3 = jax.random.split(k, 4)
        return (1.0 + 0.1 * jax.random.normal(k0, (c,), jnp.float32),   # gamma
                0.1 * jax.random.normal(k1, (c,), jnp.float32),          # beta
                0.1 * jax.random.normal(k2, (c,), jnp.float32),          # running_mean
                jax.random.uniform(k3, (c,), jnp.float32, 0.5, 1.5))     # running_var

    g1, b1, m1, v1 = bn_params(ks[0], cin)
    g2, b2, m2, v2 = bn_params(ks[1], cout)
    gd, bd, md, vd = bn_params(ks[2], cout)
    return dict(
        w1=0.1 * jax.random.normal(ks[3], (3, 3, cin, cout), jnp.float32),
        w2=0.1 * jax.random.normal(ks[4], (3, 3, cout, cout), jnp.float32),
        wd=0.1 * jax.random.normal(ks[5], (cin, cout), jnp.float32),
        bn1_g=g1, bn1_b=b1, bn1_m=m1, bn1_v=v1,
        bn2_g=g2, bn2_b=b2, bn2_m=m2, bn2_v=v2,
        bnd_g=gd, bnd_b=bd, bnd_m=md, bnd_v=vd,
    )


if __name__ == "__main__":
    key = jax.random.PRNGKey(0)
    k_x, k_p = jax.random.split(key)

    N, Cin, Hin, Win = 2, 4, 16, 16      # Down(in_channels=4, out_channels=8, pooling='Max')
    Cout = 8
    x = jax.random.normal(k_x, (N, Cin, Hin, Win), jnp.float32)   # NCHW, PyTorch convention
    params = make_params(k_p, Cin, Cout)

    ref = jax.block_until_ready(ref_forward(x, params))

    # exercise interior-tile halos (row_tile=2 -> R=4), boundary tiles (=4 -> R=2),
    # and the auto-picked tile (whole image, R=1)
    for row_tile in (2, 4, None):
        out = jax.block_until_ready(down_forward(x, params, row_tile=row_tile))
        assert out.shape == (N, Cout, Hin // 2, Win // 2), out.shape
        err = float(jnp.max(jnp.abs(out - ref)))
        assert jnp.allclose(out, ref, atol=5e-2, rtol=5e-2), (row_tile, err)

    print("KERNEL_OK")
</pallas_src>

<mosaic_0001>
module attributes {stable_mosaic.version = 11 : i64} {
  func.func @down_kernel(%arg0: i32, %arg1: i32, %arg2: memref<2x2x8x8xbf16, #tpu.memory_space<vmem>>, %arg3: memref<2x2x8x8xbf16, #tpu.memory_space<vmem>>, %arg4: memref<2x2x8x8xbf16, #tpu.memory_space<vmem>>, %arg5: memref<3x12x8xbf16, #tpu.memory_space<vmem>>, %arg6: memref<3x24x8xbf16, #tpu.memory_space<vmem>>, %arg7: memref<4x8xbf16, #tpu.memory_space<vmem>>, %arg8: memref<1x4xf32, #tpu.memory_space<vmem>>, %arg9: memref<1x4xf32, #tpu.memory_space<vmem>>, %arg10: memref<1x8xf32, #tpu.memory_space<vmem>>, %arg11: memref<1x8xf32, #tpu.memory_space<vmem>>, %arg12: memref<1x8xf32, #tpu.memory_space<vmem>>, %arg13: memref<16x8xf32, #tpu.memory_space<vmem>>) attributes {dimension_semantics = [#tpu.dimension_semantics<parallel>, #tpu.dimension_semantics<parallel>], iteration_bounds = array<i64: 2, 4>, scalar_prefetch = 0 : i64, scratch_operands = 0 : i64, tpu.core_type = #tpu.core_type<tc>, window_params = [{transform_indices = @transform_0, window_bounds = array<i64: 2, 2, 8, 8>}, {transform_indices = @transform_1, window_bounds = array<i64: 2, 2, 8, 8>}, {transform_indices = @transform_2, window_bounds = array<i64: 2, 2, 8, 8>}, {pipeline_mode = #tpu.pipeline_mode<synchronous>, transform_indices = @transform_3, window_bounds = array<i64: 3, 12, 8>}, {pipeline_mode = #tpu.pipeline_mode<synchronous>, transform_indices = @transform_4, window_bounds = array<i64: 3, 24, 8>}, {pipeline_mode = #tpu.pipeline_mode<synchronous>, transform_indices = @transform_5, window_bounds = array<i64: 4, 8>}, {pipeline_mode = #tpu.pipeline_mode<synchronous>, transform_indices = @transform_6, window_bounds = array<i64: 1, 4>}, {pipeline_mode = #tpu.pipeline_mode<synchronous>, transform_indices = @transform_7, window_bounds = array<i64: 1, 4>}, {pipeline_mode = #tpu.pipeline_mode<synchronous>, transform_indices = @transform_8, window_bounds = array<i64: 1, 8>}, {pipeline_mode = #tpu.pipeline_mode<synchronous>, transform_indices = @transform_9, window_bounds = array<i64: 1, 8>}, {pipeline_mode = #tpu.pipeline_mode<synchronous>, transform_indices = @transform_10, window_bounds = array<i64: 1, 8>}, {transform_indices = @transform_11, window_bounds = array<i64: 16, 8>}]} {
    %c0 = arith.constant 0 : index
    %c0_0 = arith.constant 0 : index
    %c0_1 = arith.constant 0 : index
    %c0_2 = arith.constant 0 : index
    %0 = vector.load %arg2[%c0, %c0_0, %c0_1, %c0_2] : memref<2x2x8x8xbf16, #tpu.memory_space<vmem>>, vector<2x2x8x8xbf16>
    %1 = arith.extf %0 : vector<2x2x8x8xbf16> to vector<2x2x8x8xf32>
    %2 = vector.extract_strided_slice %1 {offsets = [0, 0, 0, 0], sizes = [2, 1, 8, 8], strides = [1, 1, 1, 1]} : vector<2x2x8x8xf32> to vector<2x1x8x8xf32>
    %3 = vector.shape_cast %2 : vector<2x1x8x8xf32> to vector<2x8x8xf32>
    %4 = vector.extract_strided_slice %1 {offsets = [0, 1, 0, 0], sizes = [2, 1, 8, 8], strides = [1, 1, 1, 1]} : vector<2x2x8x8xf32> to vector<2x1x8x8xf32>
    %5 = vector.shape_cast %4 : vector<2x1x8x8xf32> to vector<2x8x8xf32>
    %6 = arith.maximumf %3, %5 : vector<2x8x8xf32>
    %7 = vector.extract_strided_slice %6 {offsets = [0, 0, 0], sizes = [2, 8, 4], strides = [1, 1, 1]} : vector<2x8x8xf32> to vector<2x8x4xf32>
    %8 = vector.extract_strided_slice %6 {offsets = [0, 0, 4], sizes = [2, 8, 4], strides = [1, 1, 1]} : vector<2x8x8xf32> to vector<2x8x4xf32>
    %9 = arith.maximumf %7, %8 : vector<2x8x4xf32>
    %c0_3 = arith.constant 0 : index
    %c0_4 = arith.constant 0 : index
    %c0_5 = arith.constant 0 : index
    %c0_6 = arith.constant 0 : index
    %10 = vector.load %arg3[%c0_3, %c0_4, %c0_5, %c0_6] : memref<2x2x8x8xbf16, #tpu.memory_space<vmem>>, vector<2x2x8x8xbf16>
    %11 = arith.extf %10 : vector<2x2x8x8xbf16> to vector<2x2x8x8xf32>
    %12 = vector.extract_strided_slice %11 {offsets = [0, 0, 0, 0], sizes = [2, 1, 8, 8], strides = [1, 1, 1, 1]} : vector<2x2x8x8xf32> to vector<2x1x8x8xf32>
    %13 = vector.shape_cast %12 : vector<2x1x8x8xf32> to vector<2x8x8xf32>
    %14 = vector.extract_strided_slice %11 {offsets = [0, 1, 0, 0], sizes = [2, 1, 8, 8], strides = [1, 1, 1, 1]} : vector<2x2x8x8xf32> to vector<2x1x8x8xf32>
    %15 = vector.shape_cast %14 : vector<2x1x8x8xf32> to vector<2x8x8xf32>
    %16 = arith.maximumf %13, %15 : vector<2x8x8xf32>
    %17 = vector.extract_strided_slice %16 {offsets = [0, 0, 0], sizes = [2, 8, 4], strides = [1, 1, 1]} : vector<2x8x8xf32> to vector<2x8x4xf32>
    %18 = vector.extract_strided_slice %16 {offsets = [0, 0, 4], sizes = [2, 8, 4], strides = [1, 1, 1]} : vector<2x8x8xf32> to vector<2x8x4xf32>
    %19 = arith.maximumf %17, %18 : vector<2x8x4xf32>
    %c0_7 = arith.constant 0 : index
    %c0_8 = arith.constant 0 : index
    %c0_9 = arith.constant 0 : index
    %c0_10 = arith.constant 0 : index
    %20 = vector.load %arg4[%c0_7, %c0_8, %c0_9, %c0_10] : memref<2x2x8x8xbf16, #tpu.memory_space<vmem>>, vector<2x2x8x8xbf16>
    %21 = arith.extf %20 : vector<2x2x8x8xbf16> to vector<2x2x8x8xf32>
    %22 = vector.extract_strided_slice %21 {offsets = [0, 0, 0, 0], sizes = [2, 1, 8, 8], strides = [1, 1, 1, 1]} : vector<2x2x8x8xf32> to vector<2x1x8x8xf32>
    %23 = vector.shape_cast %22 : vector<2x1x8x8xf32> to vector<2x8x8xf32>
    %24 = vector.extract_strided_slice %21 {offsets = [0, 1, 0, 0], sizes = [2, 1, 8, 8], strides = [1, 1, 1, 1]} : vector<2x2x8x8xf32> to vector<2x1x8x8xf32>
    %25 = vector.shape_cast %24 : vector<2x1x8x8xf32> to vector<2x8x8xf32>
    %26 = arith.maximumf %23, %25 : vector<2x8x8xf32>
    %27 = vector.extract_strided_slice %26 {offsets = [0, 0, 0], sizes = [2, 8, 4], strides = [1, 1, 1]} : vector<2x8x8xf32> to vector<2x8x4xf32>
    %28 = vector.extract_strided_slice %26 {offsets = [0, 0, 4], sizes = [2, 8, 4], strides = [1, 1, 1]} : vector<2x8x8xf32> to vector<2x8x4xf32>
    %29 = arith.maximumf %27, %28 : vector<2x8x4xf32>
    %c0_11 = arith.constant 0 : index
    %c0_12 = arith.constant 0 : index
    %30 = vector.load %arg8[%c0_11, %c0_12] : memref<1x4xf32, #tpu.memory_space<vmem>>, vector<1x4xf32>
    %c0_13 = arith.constant 0 : index
    %c0_14 = arith.constant 0 : index
    %31 = vector.load %arg9[%c0_13, %c0_14] : memref<1x4xf32, #tpu.memory_space<vmem>>, vector<1x4xf32>
    %c0_i32 = arith.constant 0 : i32
    %32 = arith.cmpi sgt, %arg1, %c0_i32 : i32
    %33 = arith.extui %32 : i1 to i32
    %34 = arith.sitofp %33 : i32 to f32
    %c3_i32 = arith.constant 3 : i32
    %35 = arith.cmpi slt, %arg1, %c3_i32 : i32
    %36 = arith.extui %35 : i1 to i32
    %37 = arith.sitofp %36 : i32 to f32
    %38 = vector.shape_cast %30 : vector<1x4xf32> to vector<1x1x4xf32>
    %39 = vector.broadcast %38 : vector<1x1x4xf32> to vector<2x8x4xf32>
    %40 = arith.mulf %19, %39 : vector<2x8x4xf32>
    %41 = vector.shape_cast %31 : vector<1x4xf32> to vector<1x1x4xf32>
    %42 = vector.broadcast %41 : vector<1x1x4xf32> to vector<2x8x4xf32>
    %43 = arith.addf %40, %42 : vector<2x8x4xf32>
    %cst = arith.constant 0.000000e+00 : f32
    %44 = vector.broadcast %cst : f32 to vector<2x8x4xf32>
    %45 = arith.maximumf %43, %44 : vector<2x8x4xf32>
    %46 = vector.shape_cast %30 : vector<1x4xf32> to vector<1x1x4xf32>
    %47 = vector.broadcast %46 : vector<1x1x4xf32> to vector<2x8x4xf32>
    %48 = arith.mulf %9, %47 : vector<2x8x4xf32>
    %49 = vector.shape_cast %31 : vector<1x4xf32> to vector<1x1x4xf32>
    %50 = vector.broadcast %49 : vector<1x1x4xf32> to vector<2x8x4xf32>
    %51 = arith.addf %48, %50 : vector<2x8x4xf32>
    %cst_15 = arith.constant 0.000000e+00 : f32
    %52 = vector.broadcast %cst_15 : f32 to vector<2x8x4xf32>
    %53 = arith.maximumf %51, %52 : vector<2x8x4xf32>
    %54 = vector.broadcast %34 : f32 to vector<2x8x4xf32>
    %55 = arith.mulf %53, %54 : vector<2x8x4xf32>
    %56 = vector.shape_cast %30 : vector<1x4xf32> to vector<1x1x4xf32>
    %57 = vector.broadcast %56 : vector<1x1x4xf32> to vector<2x8x4xf32>
    %58 = arith.mulf %29, %57 : vector<2x8x4xf32>
    %59 = vector.shape_cast %31 : vector<1x4xf32> to vector<1x1x4xf32>
    %60 = vector.broadcast %59 : vector<1x1x4xf32> to vector<2x8x4xf32>
    %61 = arith.addf %58, %60 : vector<2x8x4xf32>
    %cst_16 = arith.constant 0.000000e+00 : f32
    %62 = vector.broadcast %cst_16 : f32 to vector<2x8x4xf32>
    %63 = arith.maximumf %61, %62 : vector<2x8x4xf32>
    %64 = vector.broadcast %37 : f32 to vector<2x8x4xf32>
    %65 = arith.mulf %63, %64 : vector<2x8x4xf32>
    %66 = tpu.concatenate %55, %45, %65 in 0 : vector<2x8x4xf32>, vector<2x8x4xf32>, vector<2x8x4xf32> -> vector<6x8x4xf32>
    %67 = tpu.iota {dimensions = array<i32: 1>} : vector<1x8x1xi32>
    %c0_i32_17 = arith.constant 0 : i32
    %68 = vector.broadcast %c0_i32_17 : i32 to vector<1x8x1xi32>
    %69 = arith.cmpi ne, %67, %68 : vector<1x8x1xi32>
    %c7_i32 = arith.constant 7 : i32
    %70 = vector.broadcast %c7_i32 : i32 to vector<1x8x1xi32>
    %71 = arith.cmpi ne, %67, %70 : vector<1x8x1xi32>
    %cst_18 = arith.constant 0.000000e+00 : f32
    %72 = vector.broadcast %cst_18 : f32 to vector<32x8xf32>
    %73 = vector.extract_strided_slice %66 {offsets = [0, 0, 0], sizes = [4, 8, 4], strides = [1, 1, 1]} : vector<6x8x4xf32> to vector<4x8x4xf32>
    %c1_i32 = arith.constant 1 : i32
    %74 = tpu.dynamic_rotate %73 by %c1_i32 dim 1 : vector<4x8x4xf32>, i32 -> vector<4x8x4xf32>
    %cst_19 = arith.constant 0.000000e+00 : f32
    %75 = vector.shape_cast %69 : vector<1x8x1xi1> to vector<1x8x1xi1>
    %76 = vector.broadcast %75 : vector<1x8x1xi1> to vector<4x8x4xi1>
    %77 = vector.broadcast %cst_19 : f32 to vector<4x8x4xf32>
    %78 = arith.select %76, %74, %77 : vector<4x8x4xi1>, vector<4x8x4xf32>
    %c7_i32_20 = arith.constant 7 : i32
    %79 = tpu.dynamic_rotate %73 by %c7_i32_20 dim 1 : vector<4x8x4xf32>, i32 -> vector<4x8x4xf32>
    %cst_21 = arith.constant 0.000000e+00 : f32
    %80 = vector.shape_cast %71 : vector<1x8x1xi1> to vector<1x8x1xi1>
    %81 = vector.broadcast %80 : vector<1x8x1xi1> to vector<4x8x4xi1>
    %82 = vector.broadcast %cst_21 : f32 to vector<4x8x4xf32>
    %83 = arith.select %81, %79, %82 : vector<4x8x4xi1>, vector<4x8x4xf32>
    %84 = tpu.concatenate %78, %73, %83 in 2 : vector<4x8x4xf32>, vector<4x8x4xf32>, vector<4x8x4xf32> -> vector<4x8x12xf32>
    %85 = vector.shape_cast %84 : vector<4x8x12xf32> to vector<32x12xf32>
    %86 = arith.truncf %85 : vector<32x12xf32> to vector<32x12xbf16>
    %c0_22 = arith.constant 0 : index
    %c0_23 = arith.constant 0 : index
    %c0_24 = arith.constant 0 : index
    %87 = vector.load %arg5[%c0_22, %c0_23, %c0_24] : memref<3x12x8xbf16, #tpu.memory_space<vmem>>, vector<1x12x8xbf16>
    %88 = vector.shape_cast %87 : vector<1x12x8xbf16> to vector<12x8xbf16>
    %cst_25 = arith.constant dense<0.000000e+00> : vector<32x8xf32>
    %89 = tpu.matmul %86, %88, %cst_25 {dimension_numbers = #tpu.dot_dimension_numbers<[1], [0], [0], [1], [0, 0, 1, 1], [], []>} : vector<32x12xbf16>, vector<12x8xbf16>, vector<32x8xf32> -> vector<32x8xf32>
    %90 = arith.addf %72, %89 : vector<32x8xf32>
    %91 = vector.extract_strided_slice %66 {offsets = [1, 0, 0], sizes = [4, 8, 4], strides = [1, 1, 1]} : vector<6x8x4xf32> to vector<4x8x4xf32>
    %c1_i32_26 = arith.constant 1 : i32
    %92 = tpu.dynamic_rotate %91 by %c1_i32_26 dim 1 : vector<4x8x4xf32>, i32 -> vector<4x8x4xf32>
    %cst_27 = arith.constant 0.000000e+00 : f32
    %93 = vector.shape_cast %69 : vector<1x8x1xi1> to vector<1x8x1xi1>
    %94 = vector.broadcast %93 : vector<1x8x1xi1> to vector<4x8x4xi1>
    %95 = vector.broadcast %cst_27 : f32 to vector<4x8x4xf32>
    %96 = arith.select %94, %92, %95 : vector<4x8x4xi1>, vector<4x8x4xf32>
    %c7_i32_28 = arith.constant 7 : i32
    %97 = tpu.dynamic_rotate %91 by %c7_i32_28 dim 1 : vector<4x8x4xf32>, i32 -> vector<4x8x4xf32>
    %cst_29 = arith.constant 0.000000e+00 : f32
    %98 = vector.shape_cast %71 : vector<1x8x1xi1> to vector<1x8x1xi1>
    %99 = vector.broadcast %98 : vector<1x8x1xi1> to vector<4x8x4xi1>
    %100 = vector.broadcast %cst_29 : f32 to vector<4x8x4xf32>
    %101 = arith.select %99, %97, %100 : vector<4x8x4xi1>, vector<4x8x4xf32>
    %102 = tpu.concatenate %96, %91, %101 in 2 : vector<4x8x4xf32>, vector<4x8x4xf32>, vector<4x8x4xf32> -> vector<4x8x12xf32>
    %103 = vector.shape_cast %102 : vector<4x8x12xf32> to vector<32x12xf32>
    %104 = arith.truncf %103 : vector<32x12xf32> to vector<32x12xbf16>
    %c1 = arith.constant 1 : index
    %c0_30 = arith.constant 0 : index
    %c0_31 = arith.constant 0 : index
    %105 = vector.load %arg5[%c1, %c0_30, %c0_31] : memref<3x12x8xbf16, #tpu.memory_space<vmem>>, vector<1x12x8xbf16>
    %106 = vector.shape_cast %105 : vector<1x12x8xbf16> to vector<12x8xbf16>
    %cst_32 = arith.constant dense<0.000000e+00> : vector<32x8xf32>
    %107 = tpu.matmul %104, %106, %cst_32 {dimension_numbers = #tpu.dot_dimension_numbers<[1], [0], [0], [1], [0, 0, 1, 1], [], []>} : vector<32x12xbf16>, vector<12x8xbf16>, vector<32x8xf32> -> vector<32x8xf32>
    %108 = arith.addf %90, %107 : vector<32x8xf32>
    %109 = vector.extract_strided_slice %66 {offsets = [2, 0, 0], sizes = [4, 8, 4], strides = [1, 1, 1]} : vector<6x8x4xf32> to vector<4x8x4xf32>
    %c1_i32_33 = arith.constant 1 : i32
    %110 = tpu.dynamic_rotate %109 by %c1_i32_33 dim 1 : vector<4x8x4xf32>, i32 -> vector<4x8x4xf32>
    %cst_34 = arith.constant 0.000000e+00 : f32
    %111 = vector.shape_cast %69 : vector<1x8x1xi1> to vector<1x8x1xi1>
    %112 = vector.broadcast %111 : vector<1x8x1xi1> to vector<4x8x4xi1>
    %113 = vector.broadcast %cst_34 : f32 to vector<4x8x4xf32>
    %114 = arith.select %112, %110, %113 : vector<4x8x4xi1>, vector<4x8x4xf32>
    %c7_i32_35 = arith.constant 7 : i32
    %115 = tpu.dynamic_rotate %109 by %c7_i32_35 dim 1 : vector<4x8x4xf32>, i32 -> vector<4x8x4xf32>
    %cst_36 = arith.constant 0.000000e+00 : f32
    %116 = vector.shape_cast %71 : vector<1x8x1xi1> to vector<1x8x1xi1>
    %117 = vector.broadcast %116 : vector<1x8x1xi1> to vector<4x8x4xi1>
    %118 = vector.broadcast %cst_36 : f32 to vector<4x8x4xf32>
    %119 = arith.select %117, %115, %118 : vector<4x8x4xi1>, vector<4x8x4xf32>
    %120 = tpu.concatenate %114, %109, %119 in 2 : vector<4x8x4xf32>, vector<4x8x4xf32>, vector<4x8x4xf32> -> vector<4x8x12xf32>
    %121 = vector.shape_cast %120 : vector<4x8x12xf32> to vector<32x12xf32>
    %122 = arith.truncf %121 : vector<32x12xf32> to vector<32x12xbf16>
    %c2 = arith.constant 2 : index
    %c0_37 = arith.constant 0 : index
    %c0_38 = arith.constant 0 : index
    %123 = vector.load %arg5[%c2, %c0_37, %c0_38] : memref<3x12x8xbf16, #tpu.memory_space<vmem>>, vector<1x12x8xbf16>
    %124 = vector.shape_cast %123 : vector<1x12x8xbf16> to vector<12x8xbf16>
    %cst_39 = arith.constant dense<0.000000e+00> : vector<32x8xf32>
    %125 = tpu.matmul %122, %124, %cst_39 {dimension_numbers = #tpu.dot_dimension_numbers<[1], [0], [0], [1], [0, 0, 1, 1], [], []>} : vector<32x12xbf16>, vector<12x8xbf16>, vector<32x8xf32> -> vector<32x8xf32>
    %126 = arith.addf %108, %125 : vector<32x8xf32>
    %127 = vector.shape_cast %126 : vector<32x8xf32> to vector<4x8x8xf32>
    %c0_40 = arith.constant 0 : index
    %c0_41 = arith.constant 0 : index
    %128 = vector.load %arg10[%c0_40, %c0_41] : memref<1x8xf32, #tpu.memory_space<vmem>>, vector<1x8xf32>
    %129 = vector.shape_cast %128 : vector<1x8xf32> to vector<1x1x8xf32>
    %130 = vector.broadcast %129 : vector<1x1x8xf32> to vector<4x8x8xf32>
    %131 = arith.mulf %127, %130 : vector<4x8x8xf32>
    %c0_42 = arith.constant 0 : index
    %c0_43 = arith.constant 0 : index
    %132 = vector.load %arg11[%c0_42, %c0_43] : memref<1x8xf32, #tpu.memory_space<vmem>>, vector<1x8xf32>
    %133 = vector.shape_cast %132 : vector<1x8xf32> to vector<1x1x8xf32>
    %134 = vector.broadcast %133 : vector<1x1x8xf32> to vector<4x8x8xf32>
    %135 = arith.addf %131, %134 : vector<4x8x8xf32>
    %cst_44 = arith.constant 0.000000e+00 : f32
    %136 = vector.broadcast %cst_44 : f32 to vector<4x8x8xf32>
    %137 = arith.maximumf %135, %136 : vector<4x8x8xf32>
    %138 = tpu.iota {dimensions = array<i32: 0>} : vector<4x1x1xi32>
    %c0_i32_45 = arith.constant 0 : i32
    %139 = vector.broadcast %c0_i32_45 : i32 to vector<4x1x1xi32>
    %140 = arith.cmpi sgt, %138, %139 : vector<4x1x1xi32>
    %c0_i32_46 = arith.constant 0 : i32
    %141 = arith.cmpi sgt, %arg1, %c0_i32_46 : i32
    %142 = vector.broadcast %141 : i1 to vector<4x1x1xi1>
    %143 = arith.ori %140, %142 : vector<4x1x1xi1>
    %c3_i32_47 = arith.constant 3 : i32
    %144 = vector.broadcast %c3_i32_47 : i32 to vector<4x1x1xi32>
    %145 = arith.cmpi slt, %138, %144 : vector<4x1x1xi32>
    %c3_i32_48 = arith.constant 3 : i32
    %146 = arith.cmpi slt, %arg1, %c3_i32_48 : i32
    %147 = vector.broadcast %146 : i1 to vector<4x1x1xi1>
    %148 = arith.ori %145, %147 : vector<4x1x1xi1>
    %149 = arith.andi %143, %148 : vector<4x1x1xi1>
    %cst_49 = arith.constant 0.000000e+00 : f32
    %150 = vector.shape_cast %149 : vector<4x1x1xi1> to vector<4x1x1xi1>
    %151 = vector.broadcast %150 : vector<4x1x1xi1> to vector<4x8x8xi1>
    %152 = vector.broadcast %cst_49 : f32 to vector<4x8x8xf32>
    %153 = arith.select %151, %137, %152 : vector<4x8x8xi1>, vector<4x8x8xf32>
    %cst_50 = arith.constant 0.000000e+00 : f32
    %154 = vector.broadcast %cst_50 : f32 to vector<16x8xf32>
    %155 = vector.extract_strided_slice %153 {offsets = [0, 0, 0], sizes = [2, 8, 8], strides = [1, 1, 1]} : vector<4x8x8xf32> to vector<2x8x8xf32>
    %c1_i32_51 = arith.constant 1 : i32
    %156 = tpu.dynamic_rotate %155 by %c1_i32_51 dim 1 : vector<2x8x8xf32>, i32 -> vector<2x8x8xf32>
    %cst_52 = arith.constant 0.000000e+00 : f32
    %157 = vector.shape_cast %69 : vector<1x8x1xi1> to vector<1x8x1xi1>
    %158 = vector.broadcast %157 : vector<1x8x1xi1> to vector<2x8x8xi1>
    %159 = vector.broadcast %cst_52 : f32 to vector<2x8x8xf32>
    %160 = arith.select %158, %156, %159 : vector<2x8x8xi1>, vector<2x8x8xf32>
    %c7_i32_53 = arith.constant 7 : i32
    %161 = tpu.dynamic_rotate %155 by %c7_i32_53 dim 1 : vector<2x8x8xf32>, i32 -> vector<2x8x8xf32>
    %cst_54 = arith.constant 0.000000e+00 : f32
    %162 = vector.shape_cast %71 : vector<1x8x1xi1> to vector<1x8x1xi1>
    %163 = vector.broadcast %162 : vector<1x8x1xi1> to vector<2x8x8xi1>
    %164 = vector.broadcast %cst_54 : f32 to vector<2x8x8xf32>
    %165 = arith.select %163, %161, %164 : vector<2x8x8xi1>, vector<2x8x8xf32>
    %166 = tpu.concatenate %160, %155, %165 in 2 : vector<2x8x8xf32>, vector<2x8x8xf32>, vector<2x8x8xf32> -> vector<2x8x24xf32>
    %167 = vector.shape_cast %166 : vector<2x8x24xf32> to vector<16x24xf32>
    %168 = arith.truncf %167 : vector<16x24xf32> to vector<16x24xbf16>
    %c0_55 = arith.constant 0 : index
    %c0_56 = arith.constant 0 : index
    %c0_57 = arith.constant 0 : index
    %169 = vector.load %arg6[%c0_55, %c0_56, %c0_57] : memref<3x24x8xbf16, #tpu.memory_space<vmem>>, vector<1x24x8xbf16>
    %170 = vector.shape_cast %169 : vector<1x24x8xbf16> to vector<24x8xbf16>
    %cst_58 = arith.constant dense<0.000000e+00> : vector<16x8xf32>
    %171 = tpu.matmul %168, %170, %cst_58 {dimension_numbers = #tpu.dot_dimension_numbers<[1], [0], [0], [1], [0, 0, 1, 1], [], []>} : vector<16x24xbf16>, vector<24x8xbf16>, vector<16x8xf32> -> vector<16x8xf32>
    %172 = arith.addf %154, %171 : vector<16x8xf32>
    %173 = vector.extract_strided_slice %153 {offsets = [1, 0, 0], sizes = [2, 8, 8], strides = [1, 1, 1]} : vector<4x8x8xf32> to vector<2x8x8xf32>
    %c1_i32_59 = arith.constant 1 : i32
    %174 = tpu.dynamic_rotate %173 by %c1_i32_59 dim 1 : vector<2x8x8xf32>, i32 -> vector<2x8x8xf32>
    %cst_60 = arith.constant 0.000000e+00 : f32
    %175 = vector.shape_cast %69 : vector<1x8x1xi1> to vector<1x8x1xi1>
    %176 = vector.broadcast %175 : vector<1x8x1xi1> to vector<2x8x8xi1>
    %177 = vector.broadcast %cst_60 : f32 to vector<2x8x8xf32>
    %178 = arith.select %176, %174, %177 : vector<2x8x8xi1>, vector<2x8x8xf32>
    %c7_i32_61 = arith.constant 7 : i32
    %179 = tpu.dynamic_rotate %173 by %c7_i32_61 dim 1 : vector<2x8x8xf32>, i32 -> vector<2x8x8xf32>
    %cst_62 = arith.constant 0.000000e+00 : f32
    %180 = vector.shape_cast %71 : vector<1x8x1xi1> to vector<1x8x1xi1>
    %181 = vector.broadcast %180 : vector<1x8x1xi1> to vector<2x8x8xi1>
    %182 = vector.broadcast %cst_62 : f32 to vector<2x8x8xf32>
    %183 = arith.select %181, %179, %182 : vector<2x8x8xi1>, vector<2x8x8xf32>
    %184 = tpu.concatenate %178, %173, %183 in 2 : vector<2x8x8xf32>, vector<2x8x8xf32>, vector<2x8x8xf32> -> vector<2x8x24xf32>
    %185 = vector.shape_cast %184 : vector<2x8x24xf32> to vector<16x24xf32>
    %186 = arith.truncf %185 : vector<16x24xf32> to vector<16x24xbf16>
    %c1_63 = arith.constant 1 : index
    %c0_64 = arith.constant 0 : index
    %c0_65 = arith.constant 0 : index
    %187 = vector.load %arg6[%c1_63, %c0_64, %c0_65] : memref<3x24x8xbf16, #tpu.memory_space<vmem>>, vector<1x24x8xbf16>
    %188 = vector.shape_cast %187 : vector<1x24x8xbf16> to vector<24x8xbf16>
    %cst_66 = arith.constant dense<0.000000e+00> : vector<16x8xf32>
    %189 = tpu.matmul %186, %188, %cst_66 {dimension_numbers = #tpu.dot_dimension_numbers<[1], [0], [0], [1], [0, 0, 1, 1], [], []>} : vector<16x24xbf16>, vector<24x8xbf16>, vector<16x8xf32> -> vector<16x8xf32>
    %190 = arith.addf %172, %189 : vector<16x8xf32>
    %191 = vector.extract_strided_slice %153 {offsets = [2, 0, 0], sizes = [2, 8, 8], strides = [1, 1, 1]} : vector<4x8x8xf32> to vector<2x8x8xf32>
    %c1_i32_67 = arith.constant 1 : i32
    %192 = tpu.dynamic_rotate %191 by %c1_i32_67 dim 1 : vector<2x8x8xf32>, i32 -> vector<2x8x8xf32>
    %cst_68 = arith.constant 0.000000e+00 : f32
    %193 = vector.shape_cast %69 : vector<1x8x1xi1> to vector<1x8x1xi1>
    %194 = vector.broadcast %193 : vector<1x8x1xi1> to vector<2x8x8xi1>
    %195 = vector.broadcast %cst_68 : f32 to vector<2x8x8xf32>
    %196 = arith.select %194, %192, %195 : vector<2x8x8xi1>, vector<2x8x8xf32>
    %c7_i32_69 = arith.constant 7 : i32
    %197 = tpu.dynamic_rotate %191 by %c7_i32_69 dim 1 : vector<2x8x8xf32>, i32 -> vector<2x8x8xf32>
    %cst_70 = arith.constant 0.000000e+00 : f32
    %198 = vector.shape_cast %71 : vector<1x8x1xi1> to vector<1x8x1xi1>
    %199 = vector.broadcast %198 : vector<1x8x1xi1> to vector<2x8x8xi1>
    %200 = vector.broadcast %cst_70 : f32 to vector<2x8x8xf32>
    %201 = arith.select %199, %197, %200 : vector<2x8x8xi1>, vector<2x8x8xf32>
    %202 = tpu.concatenate %196, %191, %201 in 2 : vector<2x8x8xf32>, vector<2x8x8xf32>, vector<2x8x8xf32> -> vector<2x8x24xf32>
    %203 = vector.shape_cast %202 : vector<2x8x24xf32> to vector<16x24xf32>
    %204 = arith.truncf %203 : vector<16x24xf32> to vector<16x24xbf16>
    %c2_71 = arith.constant 2 : index
    %c0_72 = arith.constant 0 : index
    %c0_73 = arith.constant 0 : index
    %205 = vector.load %arg6[%c2_71, %c0_72, %c0_73] : memref<3x24x8xbf16, #tpu.memory_space<vmem>>, vector<1x24x8xbf16>
    %206 = vector.shape_cast %205 : vector<1x24x8xbf16> to vector<24x8xbf16>
    %cst_74 = arith.constant dense<0.000000e+00> : vector<16x8xf32>
    %207 = tpu.matmul %204, %206, %cst_74 {dimension_numbers = #tpu.dot_dimension_numbers<[1], [0], [0], [1], [0, 0, 1, 1], [], []>} : vector<16x24xbf16>, vector<24x8xbf16>, vector<16x8xf32> -> vector<16x8xf32>
    %208 = arith.addf %190, %207 : vector<16x8xf32>
    %209 = vector.shape_cast %19 : vector<2x8x4xf32> to vector<16x4xf32>
    %210 = arith.truncf %209 : vector<16x4xf32> to vector<16x4xbf16>
    %c0_75 = arith.constant 0 : index
    %c0_76 = arith.constant 0 : index
    %211 = vector.load %arg7[%c0_75, %c0_76] : memref<4x8xbf16, #tpu.memory_space<vmem>>, vector<4x8xbf16>
    %cst_77 = arith.constant dense<0.000000e+00> : vector<16x8xf32>
    %212 = tpu.matmul %210, %211, %cst_77 {dimension_numbers = #tpu.dot_dimension_numbers<[1], [0], [0], [1], [0, 0, 1, 1], [], []>} : vector<16x4xbf16>, vector<4x8xbf16>, vector<16x8xf32> -> vector<16x8xf32>
    %c0_78 = arith.constant 0 : index
    %c0_79 = arith.constant 0 : index
    %213 = vector.load %arg12[%c0_78, %c0_79] : memref<1x8xf32, #tpu.memory_space<vmem>>, vector<1x8xf32>
    %214 = vector.broadcast %213 : vector<1x8xf32> to vector<16x8xf32>
    %215 = arith.addf %212, %214 : vector<16x8xf32>
    %216 = arith.addf %208, %215 : vector<16x8xf32>
    %c0_80 = arith.constant 0 : index
    %c0_81 = arith.constant 0 : index
    %217 = vector.load %arg13[%c0_80, %c0_81] : memref<16x8xf32, #tpu.memory_space<vmem>>, vector<16x8xf32>
    tpu.vector_store %arg13[%c0_80, %c0_81], %216 {strides = array<i32>} : memref<16x8xf32, #tpu.memory_space<vmem>>, vector<16x8xf32>,
    return
  }
  func.func @transform_0(%arg0: i32, %arg1: i32) -> (i32, i32, i32, i32) {
    %c4_i32 = arith.constant 4 : i32
    %0 = arith.muli %arg0, %c4_i32 : i32
    %c1_i32 = arith.constant 1 : i32
    %1 = arith.muli %arg1, %c1_i32 : i32
    %2 = arith.addi %0, %1 : i32
    %c1_i32_0 = arith.constant 1 : i32
    %3 = arith.subi %2, %c1_i32_0 : i32
    %c0_i32 = arith.constant 0 : i32
    %4 = arith.maxsi %3, %c0_i32 : i32
    %c0_i32_1 = arith.constant 0 : i32
    %c0_i32_2 = arith.constant 0 : i32
    %c0_i32_3 = arith.constant 0 : i32
    %c0_i32_4 = arith.constant 0 : i32
    return %4, %c0_i32_1, %c0_i32_2, %c0_i32_3 : i32, i32, i32, i32
  }
  func.func @transform_1(%arg0: i32, %arg1: i32) -> (i32, i32, i32, i32) {
    %c4_i32 = arith.constant 4 : i32
    %0 = arith.muli %arg0, %c4_i32 : i32
    %1 = arith.addi %0, %arg1 : i32
    %c0_i32 = arith.constant 0 : i32
    %c0_i32_0 = arith.constant 0 : i32
    %c0_i32_1 = arith.constant 0 : i32
    %c0_i32_2 = arith.constant 0 : i32
    return %1, %c0_i32, %c0_i32_0, %c0_i32_1 : i32, i32, i32, i32
  }
  func.func @transform_2(%arg0: i32, %arg1: i32) -> (i32, i32, i32, i32) {
    %c4_i32 = arith.constant 4 : i32
    %0 = arith.muli %arg0, %c4_i32 : i32
    %c1_i32 = arith.constant 1 : i32
    %1 = arith.addi %arg1, %c1_i32 : i32
    %c1_i32_0 = arith.constant 1 : i32
    %2 = arith.muli %1, %c1_i32_0 : i32
    %3 = arith.addi %0, %2 : i32
    %c7_i32 = arith.constant 7 : i32
    %4 = arith.minsi %3, %c7_i32 : i32
    %c0_i32 = arith.constant 0 : i32
    %c0_i32_1 = arith.constant 0 : i32
    %c0_i32_2 = arith.constant 0 : i32
    %c0_i32_3 = arith.constant 0 : i32
    return %4, %c0_i32, %c0_i32_1, %c0_i32_2 : i32, i32, i32, i32
  }
  func.func @transform_3(%arg0: i32, %arg1: i32) -> (i32, i32, i32) {
    %c0_i32 = arith.constant 0 : i32
    %c0_i32_0 = arith.constant 0 : i32
    %c0_i32_1 = arith.constant 0 : i32
    %c0_i32_2 = arith.constant 0 : i32
    return %c0_i32, %c0_i32_0, %c0_i32_1 : i32, i32, i32
  }
  func.func @transform_4(%arg0: i32, %arg1: i32) -> (i32, i32, i32) {
    %c0_i32 = arith.constant 0 : i32
    %c0_i32_0 = arith.constant 0 : i32
    %c0_i32_1 = arith.constant 0 : i32
    %c0_i32_2 = arith.constant 0 : i32
    return %c0_i32, %c0_i32_0, %c0_i32_1 : i32, i32, i32
  }
  func.func @transform_5(%arg0: i32, %arg1: i32) -> (i32, i32) {
    %c0_i32 = arith.constant 0 : i32
    %c0_i32_0 = arith.constant 0 : i32
    %c0_i32_1 = arith.constant 0 : i32
    return %c0_i32, %c0_i32_0 : i32, i32
  }
  func.func @transform_6(%arg0: i32, %arg1: i32) -> (i32, i32) {
    %c0_i32 = arith.constant 0 : i32
    %c0_i32_0 = arith.constant 0 : i32
    %c0_i32_1 = arith.constant 0 : i32
    return %c0_i32, %c0_i32_0 : i32, i32
  }
  func.func @transform_7(%arg0: i32, %arg1: i32) -> (i32, i32) {
    %c0_i32 = arith.constant 0 : i32
    %c0_i32_0 = arith.constant 0 : i32
    %c0_i32_1 = arith.constant 0 : i32
    return %c0_i32, %c0_i32_0 : i32, i32
  }
  func.func @transform_8(%arg0: i32, %arg1: i32) -> (i32, i32) {
    %c0_i32 = arith.constant 0 : i32
    %c0_i32_0 = arith.constant 0 : i32
    %c0_i32_1 = arith.constant 0 : i32
    return %c0_i32, %c0_i32_0 : i32, i32
  }
  func.func @transform_9(%arg0: i32, %arg1: i32) -> (i32, i32) {
    %c0_i32 = arith.constant 0 : i32
    %c0_i32_0 = arith.constant 0 : i32
    %c0_i32_1 = arith.constant 0 : i32
    return %c0_i32, %c0_i32_0 : i32, i32
  }
  func.func @transform_10(%arg0: i32, %arg1: i32) -> (i32, i32) {
    %c0_i32 = arith.constant 0 : i32
    %c0_i32_0 = arith.constant 0 : i32
    %c0_i32_1 = arith.constant 0 : i32
    return %c0_i32, %c0_i32_0 : i32, i32
  }
  func.func @transform_11(%arg0: i32, %arg1: i32) -> (i32, i32) {
    %c4_i32 = arith.constant 4 : i32
    %0 = arith.muli %arg0, %c4_i32 : i32
    %1 = arith.addi %0, %arg1 : i32
    %c0_i32 = arith.constant 0 : i32
    %c0_i32_0 = arith.constant 0 : i32
    return %1, %c0_i32 : i32, i32
  }
}

</mosaic_0001>

<llo_original>
// kernel: tpu_custom_call.1
$region0: #{tpu_custom_call.1}
  #allocation0 [shape = 'u32[]', space=smem, size = 0x4, offset = 0x4, fixed_abs, tag = 'smem constant byte address 0x4 - core index']
  #allocation1 [shape = 'u32[144,128]{1,0:T(1,128)}', space=vmem, size = 0x12000, scoped, tag = 'internal scratch']
  %s0 = inlined_call_operand.vmem [shape: bf16[16,2,8,8], index: 0, kind: input, shape index: {}]
  %s1 = inlined_call_operand.vmem [shape: bf16[16,2,8,8], index: 1, kind: input, shape index: {}]
  %s2 = inlined_call_operand.vmem [shape: bf16[16,2,8,8], index: 2, kind: input, shape index: {}]
  %s3 = inlined_call_operand.vmem [shape: bf16[3,12,8], index: 3, kind: input, shape index: {}]
  %s4 = inlined_call_operand.vmem [shape: bf16[3,24,8], index: 4, kind: input, shape index: {}]
  %s5 = inlined_call_operand.vmem [shape: bf16[4,8], index: 5, kind: input, shape index: {}]
  %s6 = inlined_call_operand.vmem [shape: f32[1,4], index: 6, kind: input, shape index: {}]
  %s7 = inlined_call_operand.vmem [shape: f32[1,4], index: 7, kind: input, shape index: {}]
  %s8 = inlined_call_operand.vmem [shape: f32[1,8], index: 8, kind: input, shape index: {}]
  %s9 = inlined_call_operand.vmem [shape: f32[1,8], index: 9, kind: input, shape index: {}]
  %s10 = inlined_call_operand.vmem [shape: f32[1,8], index: 10, kind: input, shape index: {}]
  %s11 = inlined_call_operand.vmem [shape: f32[128,8], index: 11, kind: output, shape index: {}]
  %s12 = sld [smem:[#allocation0]]
  $region77: #{tpu_custom_call.1} parent=0
    _
  %s14 = ssub.s32 1, %s12
  %s15 = scalar_select 0, %s14, %s12
  loop: start=0, step=1, limit=10
  $region2: #{tpu_custom_call.1} parent=0 // loop_pre_header
    _
  $region3: #{tpu_custom_call.1} parent=0 // loop_header
    %s17 = sphi 0, %s21
    %p18 = scmp.ge.s32.totalorder %s17, 10
    %s24 = sphi 0, %s36
    %s25 = sphi 0, %s32
    %s26 = sphi 0, %s24
    %s27 = sphi 0, %s25
    %s28 = sphi 0, %s26
    %s29 = sphi 0, %s27
    %s49 = sphi 0, %s51
    %s52 = sphi 0, %s49
    %s53 = sphi 0, %s52
    %s69 = sphi 0, %s53
    %s79 = sphi 0, %s81
    %s82 = sphi 0, %s79
    %s83 = sphi 0, %s82
    %s99 = sphi 0, %s83
    %s115 = sphi 0, %s117
    %s118 = sphi 0, %s115
    %s119 = sphi 0, %s118
    %s135 = sphi 0, %s119
    %s139 = sphi 0, %s139
    %s141 = sphi 0, %s139
    %s142 = sphi 0, %s141
    %s156 = sphi 0, %s142
    %s160 = sphi 0, %s160
    %s162 = sphi 0, %s160
    %s163 = sphi 0, %s162
    %s177 = sphi 0, %s163
    %s181 = sphi 0, %s181
    %s183 = sphi 0, %s181
    %s184 = sphi 0, %s183
    %s198 = sphi 0, %s184
    %s202 = sphi 0, %s202
    %s204 = sphi 0, %s202
    %s205 = sphi 0, %s204
    %s219 = sphi 0, %s205
    %s223 = sphi 0, %s223
    %s225 = sphi 0, %s223
    %s226 = sphi 0, %s225
    %s240 = sphi 0, %s226
    %s244 = sphi 0, %s244
    %s246 = sphi 0, %s244
    %s247 = sphi 0, %s246
    %s261 = sphi 0, %s247
    %s265 = sphi 0, %s265
    %s267 = sphi 0, %s265
    %s268 = sphi 0, %s267
    %s282 = sphi 0, %s268
    %s286 = sphi 0, %s286
    %s288 = sphi 0, %s286
    %s289 = sphi 0, %s288
    %s303 = sphi 0, %s289
    %s313 = sphi 0, %s315
    %s316 = sphi 0, %s313
    %s317 = sphi 0, %s316
    %s333 = sphi 0, %s317
  $region4: #{tpu_custom_call.1} parent=0 // loop_header_branch
    %20 = sbr.rel (%p18) target = $region8
  $region5: #{tpu_custom_call.1} parent=0 // loop_body
    %s22 = ssub.s32 %s17, 1
    %s23 = ssub.s32 %s17, 2
    %s30 = sadd.s32 1, %s25
    %p31 = scmp.ge.s32.totalorder %s30, 4
    %s32 = scalar_select %p31, 0, %s30
    %s33 = sadd.s32 1, %s24
    %s34 = scalar_select %p31, %s33, %s24
    %p35 = scmp.ge.s32.totalorder %s34, 2
    %s36 = scalar_select %p35, 0, %s34
    %s37 = smul.u32 %s24, 4
    %s38 = sadd.s32 %s37, %s25
    %s39 = ssub.s32 %s38, 1
    %p40 = scmp.gt.s32.totalorder %s39, 0
    %s41 = scalar_select %p40, %s39, 0
    %s42 = smul.u32 %s36, 4
    %s43 = sadd.s32 %s42, %s32
    %s44 = ssub.s32 %s43, 1
    %p45 = scmp.gt.s32.totalorder %s44, 0
    %s46 = scalar_select %p45, %s44, 0
    %s47 = ssub.s32 %s41, %s46
    %p48 = scmp.eq.s32.totalorder %s47, 0
    %s50 = sadd.s32 %s49, 1
    %s51 = scalar_select %p48, %s49, %s50
    %p54 = pneg %p48
    %p55 = scmp.eq.s32.totalorder %s17, 7
    %p56 = por %p54, %p55
    %p57 = scmp.ne.s32.totalorder %s49, %s52
    %p58 = scmp.eq.s32.totalorder %s17, 0
    %p59 = por %p57, %p58
    %p60 = scmp.ne.s32.totalorder %s49, %s52
    %p61 = scmp.eq.s32.totalorder %s22, 7
    %p62 = por %p60, %p61
    %p63 = scmp.ne.s32.totalorder %s52, %s53
    %p64 = scmp.eq.s32.totalorder %s22, 0
    %p65 = por %p63, %p64
    %p66 = scmp.ne.s32.totalorder %s52, %s53
    %p67 = scmp.eq.s32.totalorder %s23, 7
    %p68 = por %p66, %p67
    %p70 = scmp.ne.s32.totalorder %s53, %s69
    %p71 = scmp.eq.s32.totalorder %s23, 0
    %p72 = por %p70, %p71
    %s73 = smul.u32 %s24, 4
    %s74 = sadd.s32 %s73, %s25
    %s75 = smul.u32 %s36, 4
    %s76 = sadd.s32 %s75, %s32
    %s77 = ssub.s32 %s74, %s76
    %p78 = scmp.eq.s32.totalorder %s77, 0
    %s80 = sadd.s32 %s79, 1
    %s81 = scalar_select %p78, %s79, %s80
    %p84 = pneg %p78
    %p85 = scmp.eq.s32.totalorder %s17, 7
    %p86 = por %p84, %p85
    %p87 = scmp.ne.s32.totalorder %s79, %s82
    %p88 = scmp.eq.s32.totalorder %s17, 0
    %p89 = por %p87, %p88
    %p90 = scmp.ne.s32.totalorder %s79, %s82
    %p91 = scmp.eq.s32.totalorder %s22, 7
    %p92 = por %p90, %p91
    %p93 = scmp.ne.s32.totalorder %s82, %s83
    %p94 = scmp.eq.s32.totalorder %s22, 0
    %p95 = por %p93, %p94
    %p96 = scmp.ne.s32.totalorder %s82, %s83
    %p97 = scmp.eq.s32.totalorder %s23, 7
    %p98 = por %p96, %p97
    %p100 = scmp.ne.s32.totalorder %s83, %s99
    %p101 = scmp.eq.s32.totalorder %s23, 0
    %p102 = por %p100, %p101
    %s103 = smul.u32 %s24, 4
    %s104 = sadd.s32 %s25, 1
    %s105 = sadd.s32 %s103, %s104
    %p106 = scmp.lt.s32.totalorder %s105, 7
    %s107 = scalar_select %p106, %s105, 7
    %s108 = smul.u32 %s36, 4
    %s109 = sadd.s32 %s32, 1
    %s110 = sadd.s32 %s108, %s109
    %p111 = scmp.lt.s32.totalorder %s110, 7
    %s112 = scalar_select %p111, %s110, 7
    %s113 = ssub.s32 %s107, %s112
    %p114 = scmp.eq.s32.totalorder %s113, 0
    %s116 = sadd.s32 %s115, 1
    %s117 = scalar_select %p114, %s115, %s116
    %p120 = pneg %p114
    %p121 = scmp.eq.s32.totalorder %s17, 7
    %p122 = por %p120, %p121
    %p123 = scmp.ne.s32.totalorder %s115, %s118
    %p124 = scmp.eq.s32.totalorder %s17, 0
    %p125 = por %p123, %p124
    %p126 = scmp.ne.s32.totalorder %s115, %s118
    %p127 = scmp.eq.s32.totalorder %s22, 7
    %p128 = por %p126, %p127
    %p129 = scmp.ne.s32.totalorder %s118, %s119
    %p130 = scmp.eq.s32.totalorder %s22, 0
    %p131 = por %p129, %p130
    %p132 = scmp.ne.s32.totalorder %s118, %s119
    %p133 = scmp.eq.s32.totalorder %s23, 7
    %p134 = por %p132, %p133
    %p136 = scmp.ne.s32.totalorder %s119, %s135
    %p137 = scmp.eq.s32.totalorder %s23, 0
    %p138 = por %p136, %p137
    %s140 = sadd.s32 %s139, 1
    %p143 = scmp.eq.s32.totalorder %s17, 7
    %p144 = scmp.ne.s32.totalorder %s139, %s141
    %p145 = scmp.eq.s32.totalorder %s17, 0
    %p146 = por %p144, %p145
    %p147 = scmp.ne.s32.totalorder %s139, %s141
    %p148 = scmp.eq.s32.totalorder %s22, 7
    %p149 = por %p147, %p148
    %p150 = scmp.ne.s32.totalorder %s141, %s142
    %p151 = scmp.eq.s32.totalorder %s22, 0
    %p152 = por %p150, %p151
    %p153 = scmp.ne.s32.totalorder %s141, %s142
    %p154 = scmp.eq.s32.totalorder %s23, 7
    %p155 = por %p153, %p154
    %p157 = scmp.ne.s32.totalorder %s142, %s156
    %p158 = scmp.eq.s32.totalorder %s23, 0
    %p159 = por %p157, %p158
    %s161 = sadd.s32 %s160, 1
    %p164 = scmp.eq.s32.totalorder %s17, 7
    %p165 = scmp.ne.s32.totalorder %s160, %s162
    %p166 = scmp.eq.s32.totalorder %s17, 0
    %p167 = por %p165, %p166
    %p168 = scmp.ne.s32.totalorder %s160, %s162
    %p169 = scmp.eq.s32.totalorder %s22, 7
    %p170 = por %p168, %p169
    %p171 = scmp.ne.s32.totalorder %s162, %s163
    %p172 = scmp.eq.s32.totalorder %s22, 0
    %p173 = por %p171, %p172
    %p174 = scmp.ne.s32.totalorder %s162, %s163
    %p175 = scmp.eq.s32.totalorder %s23, 7
    %p176 = por %p174, %p175
    %p178 = scmp.ne.s32.totalorder %s163, %s177
    %p179 = scmp.eq.s32.totalorder %s23, 0
    %p180 = por %p178, %p179
    %s182 = sadd.s32 %s181, 1
    %p185 = scmp.eq.s32.totalorder %s17, 7
    %p186 = scmp.ne.s32.totalorder %s181, %s183
    %p187 = scmp.eq.s32.totalorder %s17, 0
    %p188 = por %p186, %p187
    %p189 = scmp.ne.s32.totalorder %s181, %s183
    %p190 = scmp.eq.s32.totalorder %s22, 7
    %p191 = por %p189, %p190
    %p192 = scmp.ne.s32.totalorder %s183, %s184
    %p193 = scmp.eq.s32.totalorder %s22, 0
    %p194 = por %p192, %p193
    %p195 = scmp.ne.s32.totalorder %s183, %s184
    %p196 = scmp.eq.s32.totalorder %s23, 7
    %p197 = por %p195, %p196
    %p199 = scmp.ne.s32.totalorder %s184, %s198
    %p200 = scmp.eq.s32.totalorder %s23, 0
    %p201 = por %p199, %p200
    %s203 = sadd.s32 %s202, 1
    %p206 = scmp.eq.s32.totalorder %s17, 7
    %p207 = scmp.ne.s32.totalorder %s202, %s204
    %p208 = scmp.eq.s32.totalorder %s17, 0
    %p209 = por %p207, %p208
    %p210 = scmp.ne.s32.totalorder %s202, %s204
    %p211 = scmp.eq.s32.totalorder %s22, 7
    %p212 = por %p210, %p211
    %p213 = scmp.ne.s32.totalorder %s204, %s205
    %p214 = scmp.eq.s32.totalorder %s22, 0
    %p215 = por %p213, %p214
    %p216 = scmp.ne.s32.totalorder %s204, %s205
    %p217 = scmp.eq.s32.totalorder %s23, 7
    %p218 = por %p216, %p217
    %p220 = scmp.ne.s32.totalorder %s205, %s219
    %p221 = scmp.eq.s32.totalorder %s23, 0
    %p222 = por %p220, %p221
    %s224 = sadd.s32 %s223, 1
    %p227 = scmp.eq.s32.totalorder %s17, 7
    %p228 = scmp.ne.s32.totalorder %s223, %s225
    %p229 = scmp.eq.s32.totalorder %s17, 0
    %p230 = por %p228, %p229
    %p231 = scmp.ne.s32.totalorder %s223, %s225
    %p232 = scmp.eq.s32.totalorder %s22, 7
    %p233 = por %p231, %p232
    %p234 = scmp.ne.s32.totalorder %s225, %s226
    %p235 = scmp.eq.s32.totalorder %s22, 0
    %p236 = por %p234, %p235
    %p237 = scmp.ne.s32.totalorder %s225, %s226
    %p238 = scmp.eq.s32.totalorder %s23, 7
    %p239 = por %p237, %p238
    %p241 = scmp.ne.s32.totalorder %s226, %s240
    %p242 = scmp.eq.s32.totalorder %s23, 0
    %p243 = por %p241, %p242
    %s245 = sadd.s32 %s244, 1
    %p248 = scmp.eq.s32.totalorder %s17, 7
    %p249 = scmp.ne.s32.totalorder %s244, %s246
    %p250 = scmp.eq.s32.totalorder %s17, 0
    %p251 = por %p249, %p250
    %p252 = scmp.ne.s32.totalorder %s244, %s246
    %p253 = scmp.eq.s32.totalorder %s22, 7
    %p254 = por %p252, %p253
    %p255 = scmp.ne.s32.totalorder %s246, %s247
    %p256 = scmp.eq.s32.totalorder %s22, 0
    %p257 = por %p255, %p256
    %p258 = scmp.ne.s32.totalorder %s246, %s247
    %p259 = scmp.eq.s32.totalorder %s23, 7
    %p260 = por %p258, %p259
    %p262 = scmp.ne.s32.totalorder %s247, %s261
    %p263 = scmp.eq.s32.totalorder %s23, 0
    %p264 = por %p262, %p263
    %s266 = sadd.s32 %s265, 1
    %p269 = scmp.eq.s32.totalorder %s17, 7
    %p270 = scmp.ne.s32.totalorder %s265, %s267
    %p271 = scmp.eq.s32.totalorder %s17, 0
    %p272 = por %p270, %p271
    %p273 = scmp.ne.s32.totalorder %s265, %s267
    %p274 = scmp.eq.s32.totalorder %s22, 7
    %p275 = por %p273, %p274
    %p276 = scmp.ne.s32.totalorder %s267, %s268
    %p277 = scmp.eq.s32.totalorder %s22, 0
    %p278 = por %p276, %p277
    %p279 = scmp.ne.s32.totalorder %s267, %s268
    %p280 = scmp.eq.s32.totalorder %s23, 7
    %p281 = por %p279, %p280
    %p283 = scmp.ne.s32.totalorder %s268, %s282
    %p284 = scmp.eq.s32.totalorder %s23, 0
    %p285 = por %p283, %p284
    %s287 = sadd.s32 %s286, 1
    %p290 = scmp.eq.s32.totalorder %s17, 7
    %p291 = scmp.ne.s32.totalorder %s286, %s288
    %p292 = scmp.eq.s32.totalorder %s17, 0
    %p293 = por %p291, %p292
    %p294 = scmp.ne.s32.totalorder %s286, %s288
    %p295 = scmp.eq.s32.totalorder %s22, 7
    %p296 = por %p294, %p295
    %p297 = scmp.ne.s32.totalorder %s288, %s289
    %p298 = scmp.eq.s32.totalorder %s22, 0
    %p299 = por %p297, %p298
    %p300 = scmp.ne.s32.totalorder %s288, %s289
    %p301 = scmp.eq.s32.totalorder %s23, 7
    %p302 = por %p300, %p301
    %p304 = scmp.ne.s32.totalorder %s289, %s303
    %p305 = scmp.eq.s32.totalorder %s23, 0
    %p306 = por %p304, %p305
    %s307 = smul.u32 %s24, 4
    %s308 = sadd.s32 %s307, %s25
    %s309 = smul.u32 %s36, 4
    %s310 = sadd.s32 %s309, %s32
    %s311 = ssub.s32 %s308, %s310
    %p312 = scmp.eq.s32.totalorder %s311, 0
    %s314 = sadd.s32 %s313, 1
    %s315 = scalar_select %p312, %s313, %s314
    %p318 = pneg %p312
    %p319 = scmp.eq.s32.totalorder %s17, 7
    %p320 = por %p318, %p319
    %p321 = scmp.ne.s32.totalorder %s313, %s316
    %p322 = scmp.eq.s32.totalorder %s17, 0
    %p323 = por %p321, %p322
    %p324 = scmp.ne.s32.totalorder %s313, %s316
    %p325 = scmp.eq.s32.totalorder %s22, 7
    %p326 = por %p324, %p325
    %p327 = scmp.ne.s32.totalorder %s316, %s317
    %p328 = scmp.eq.s32.totalorder %s22, 0
    %p329 = por %p327, %p328
    %p330 = scmp.ne.s32.totalorder %s316, %s317
    %p331 = scmp.eq.s32.totalorder %s23, 7
    %p332 = por %p330, %p331
    %p334 = scmp.ne.s32.totalorder %s317, %s333
    %p335 = scmp.eq.s32.totalorder %s23, 0
    %p336 = por %p334, %p335
    %p337 = scmp.le.s32.totalorder 1, %s17
    %p338 = scmp.lt.s32.totalorder %s17, 9
    %p339 = pnand %p337, %p338
    %p340 = pneg %p339
    // Predicated region
    $region9: #{tpu_custom_call.1} parent=5 // pred_check
      _
    $region10: #{tpu_custom_call.1} parent=5 // pred_check_branch
      %342 = sbr.rel (%p339) target = $region12
    $region11: #{tpu_custom_call.1} parent=5 // pred_region
      %s343 = ssub.s32 %s17, 1
      // Predicated region
      $region13: #{tpu_custom_call.1} parent=11 // pred_check
        %p344 = pneg %p152
      $region14: #{tpu_custom_call.1} parent=11 // pred_check_branch
        %346 = sbr.rel (%p344) target = $region16
      $region15: #{tpu_custom_call.1} parent=11 // pred_region
        _
      $region16: #{tpu_custom_call.1} parent=11 // pred_fallthru
        _
      // Predicated region
      $region17: #{tpu_custom_call.1} parent=11 // pred_check
        %p347 = pneg %p173
      $region18: #{tpu_custom_call.1} parent=11 // pred_check_branch
        %349 = sbr.rel (%p347) target = $region20
      $region19: #{tpu_custom_call.1} parent=11 // pred_region
        _
      $region20: #{tpu_custom_call.1} parent=11 // pred_fallthru
        _
      // Predicated region
      $region21: #{tpu_custom_call.1} parent=11 // pred_check
        %p350 = pneg %p194
      $region22: #{tpu_custom_call.1} parent=11 // pred_check_branch
        %352 = sbr.rel (%p350) target = $region24
      $region23: #{tpu_custom_call.1} parent=11 // pred_region
        _
      $region24: #{tpu_custom_call.1} parent=11 // pred_fallthru
        _
      // Predicated region
      $region25: #{tpu_custom_call.1} parent=11 // pred_check
        %p353 = pneg %p215
      $region26: #{tpu_custom_call.1} parent=11 // pred_check_branch
        %355 = sbr.rel (%p353) target = $region28
      $region27: #{tpu_custom_call.1} parent=11 // pred_region
        _
      $region28: #{tpu_custom_call.1} parent=11 // pred_fallthru
        _
      // Predicated region
      $region29: #{tpu_custom_call.1} parent=11 // pred_check
        %p356 = pneg %p236
      $region30: #{tpu_custom_call.1} parent=11 // pred_check_branch
        %358 = sbr.rel (%p356) target = $region32
      $region31: #{tpu_custom_call.1} parent=11 // pred_region
        _
      $region32: #{tpu_custom_call.1} parent=11 // pred_fallthru
        _
      // Predicated region
      $region33: #{tpu_custom_call.1} parent=11 // pred_check
        %p359 = pneg %p257
      $region34: #{tpu_custom_call.1} parent=11 // pred_check_branch
        %361 = sbr.rel (%p359) target = $region36
      $region35: #{tpu_custom_call.1} parent=11 // pred_region
        _
      $region36: #{tpu_custom_call.1} parent=11 // pred_fallthru
        _
      // Predicated region
      $region37: #{tpu_custom_call.1} parent=11 // pred_check
        %p362 = pneg %p278
      $region38: #{tpu_custom_call.1} parent=11 // pred_check_branch
        %364 = sbr.rel (%p362) target = $region40
      $region39: #{tpu_custom_call.1} parent=11 // pred_region
        _
      $region40: #{tpu_custom_call.1} parent=11 // pred_fallthru
        _
      // Predicated region
      $region41: #{tpu_custom_call.1} parent=11 // pred_check
        %p365 = pneg %p299
      $region42: #{tpu_custom_call.1} parent=11 // pred_check_branch
        %367 = sbr.rel (%p365) target = $region44
      $region43: #{tpu_custom_call.1} parent=11 // pred_region
        _
      $region44: #{tpu_custom_call.1} parent=11 // pred_fallthru
        _
    $region12: #{tpu_custom_call.1} parent=5 // pred_fallthru
      _
    %p368 = scmp.lt.s32.totalorder %s17, 8
    // Predicated region
    $region45: #{tpu_custom_call.1} parent=5 // pred_check
      %p369 = pneg %p368
    $region46: #{tpu_custom_call.1} parent=5 // pred_check_branch
      %371 = sbr.rel (%p369) target = $region48
    $region47: #{tpu_custom_call.1} parent=5 // pred_region
      // Predicated region
      $region49: #{tpu_custom_call.1} parent=47 // pred_check
        %p372 = pneg %p59
      $region50: #{tpu_custom_call.1} parent=47 // pred_check_branch
        %374 = sbr.rel (%p372) target = $region52
      $region51: #{tpu_custom_call.1} parent=47 // pred_region
        %s375 = smul.u32 %s24, 4
        %s376 = sadd.s32 %s375, %s25
        %s377 = ssub.s32 %s376, 1
        %p378 = scmp.gt.s32.totalorder %s377, 0
        %s379 = scalar_select %p378, %s377, 0
        %s380 = smul.u32 2, %s379
        %p381 = scmp.lt.s32.totalorder %s380, 15
        %s382 = scalar_select %p381, %s380, 15
        %s383 = smul.addr %s382, 2
        %s384 = smul.addr %s383, 4
        %s385 = scalar_lea.vmem %s0, %s384
        %s386 = smul.u32 %s24, 4
        %s387 = sadd.s32 %s386, %s25
        %s388 = ssub.s32 %s387, 1
        %p389 = scmp.gt.s32.totalorder %s388, 0
        %s390 = scalar_select %p389, %s388, 0
        %s391 = smul.u32 2, %s390
      $region52: #{tpu_custom_call.1} parent=47 // pred_fallthru
        _
      // Predicated region
      $region53: #{tpu_custom_call.1} parent=47 // pred_check
        %p392 = pneg %p89
      $region54: #{tpu_custom_call.1} parent=47 // pred_check_branch
        %394 = sbr.rel (%p392) target = $region56
      $region55: #{tpu_custom_call.1} parent=47 // pred_region
        %s395 = smul.u32 %s24, 4
        %s396 = sadd.s32 %s395, %s25
        %s397 = smul.u32 2, %s396
        %p398 = scmp.lt.s32.totalorder %s397, 15
        %s399 = scalar_select %p398, %s397, 15
        %s400 = smul.addr %s399, 2
        %s401 = smul.addr %s400, 4
        %s402 = scalar_lea.vmem %s1, %s401
        %s403 = smul.u32 %s24, 4
        %s404 = sadd.s32 %s403, %s25
        %s405 = smul.u32 2, %s404
      $region56: #{tpu_custom_call.1} parent=47 // pred_fallthru
        _
      // Predicated region
      $region57: #{tpu_custom_call.1} parent=47 // pred_check
        %p406 = pneg %p125
      $region58: #{tpu_custom_call.1} parent=47 // pred_check_branch
        %408 = sbr.rel (%p406) target = $region60
      $region59: #{tpu_custom_call.1} parent=47 // pred_region
        %s409 = smul.u32 %s24, 4
        %s410 = sadd.s32 %s25, 1
        %s411 = sadd.s32 %s409, %s410
        %p412 = scmp.lt.s32.totalorder %s411, 7
        %s413 = scalar_select %p412, %s411, 7
        %s414 = smul.u32 2, %s413
        %p415 = scmp.lt.s32.totalorder %s414, 15
        %s416 = scalar_select %p415, %s414, 15
        %s417 = smul.addr %s416, 2
        %s418 = smul.addr %s417, 4
        %s419 = scalar_lea.vmem %s2, %s418
        %s420 = smul.u32 %s24, 4
        %s421 = sadd.s32 %s25, 1
        %s422 = sadd.s32 %s420, %s421
        %p423 = scmp.lt.s32.totalorder %s422, 7
        %s424 = scalar_select %p423, %s422, 7
        %s425 = smul.u32 2, %s424
      $region60: #{tpu_custom_call.1} parent=47 // pred_fallthru
        _
    $region48: #{tpu_custom_call.1} parent=5 // pred_fallthru
      _
    %p426 = scmp.le.s32.totalorder 1, %s17
    %p427 = scmp.lt.s32.totalorder %s17, 9
    %p428 = pnand %p426, %p427
    %p429 = pneg %p428
    // Predicated region
    $region61: #{tpu_custom_call.1} parent=5 // pred_check
      _
    $region62: #{tpu_custom_call.1} parent=5 // pred_check_branch
      %431 = sbr.rel (%p428) target = $region64
    $region63: #{tpu_custom_call.1} parent=5 // pred_region
      %s432 = ssub.s32 %s17, 1
      %s433 = smul.u32 %s26, 4
      %s434 = sadd.s32 %s433, %s27
      %s435 = ssub.s32 %s434, 1
      %p436 = scmp.gt.s32.totalorder %s435, 0
      %s437 = scalar_select %p436, %s435, 0
      %s438 = smul.u32 2, %s437
      %p439 = scmp.lt.s32.totalorder %s438, 15
      %s440 = scalar_select %p439, %s438, 15
      %s441 = smul.addr %s440, 2
      %s442 = smul.addr %s441, 4
      %s443 = scalar_lea.vmem %s0, %s442
      %p444 = pneg %p65
      %p445 = pneg %p62
      %s446 = smul.u32 %s26, 4
      %s447 = sadd.s32 %s446, %s27
      %s448 = smul.u32 2, %s447
      %p449 = scmp.lt.s32.totalorder %s448, 15
      %s450 = scalar_select %p449, %s448, 15
      %s451 = smul.addr %s450, 2
      %s452 = smul.addr %s451, 4
      %s453 = scalar_lea.vmem %s1, %s452
      %p454 = pneg %p95
      %p455 = pneg %p92
      %s456 = smul.u32 %s26, 4
      %s457 = sadd.s32 %s27, 1
      %s458 = sadd.s32 %s456, %s457
      %p459 = scmp.lt.s32.totalorder %s458, 7
      %s460 = scalar_select %p459, %s458, 7
      %s461 = smul.u32 2, %s460
      %p462 = scmp.lt.s32.totalorder %s461, 15
      %s463 = scalar_select %p462, %s461, 15
      %s464 = smul.addr %s463, 2
      %s465 = smul.addr %s464, 4
      %s466 = scalar_lea.vmem %s2, %s465
      %p467 = pneg %p131
      %p468 = pneg %p128
      %p469 = pneg %p152
      %p470 = pneg %p149
      %p471 = pneg %p173
      %p472 = pneg %p170
      %p473 = pneg %p194
      %p474 = pneg %p191
      %p475 = pneg %p215
      %p476 = pneg %p212
      %p477 = pneg %p236
      %p478 = pneg %p233
      %p479 = pneg %p257
      %p480 = pneg %p254
      %p481 = pneg %p278
      %p482 = pneg %p275
      %p483 = pneg %p299
      %p484 = pneg %p296
      %p485 = pneg %p329
      %p486 = pneg %p326
      %s487 = smul.u32 %s26, 4
      %s488 = sadd.s32 %s487, %s27
      %s489 = smul.u32 2, %s488
      %p490 = scmp.lt.s32.totalorder %s489, 15
      %s491 = scalar_select %p490, %s489, 15
      %s492 = smul.addr %s491, 8
      %s493 = scalar_lea.vmem %s11, %s492
      %s494 = smul.u32 %s26, 4
      %s495 = sadd.s32 %s494, %s27
      %s496 = ssub.s32 %s495, 1
      %p497 = scmp.gt.s32.totalorder %s496, 0
      %s498 = scalar_select %p497, %s496, 0
      %s499 = smul.u32 2, %s498
      %p500 = scmp.lt.s32.totalorder %s499, 15
      %s501 = scalar_select %p500, %s499, 15
      %s502 = smul.addr %s501, 2
      %s503 = smul.addr %s502, 4
      %s504 = scalar_lea.vmem %s0, %s503
      %s505 = smul.u32 %s26, 4
      %s506 = sadd.s32 %s505, %s27
      %s507 = ssub.s32 %s506, 1
      %p508 = scmp.gt.s32.totalorder %s507, 0
      %s509 = scalar_select %p508, %s507, 0
      %s510 = smul.u32 2, %s509
      %s511 = smul.u32 %s26, 4
      %s512 = sadd.s32 %s511, %s27
      %s513 = smul.u32 2, %s512
      %p514 = scmp.lt.s32.totalorder %s513, 15
      %s515 = scalar_select %p514, %s513, 15
      %s516 = smul.addr %s515, 2
      %s517 = smul.addr %s516, 4
      %s518 = scalar_lea.vmem %s1, %s517
      %s519 = smul.u32 %s26, 4
      %s520 = sadd.s32 %s519, %s27
      %s521 = smul.u32 2, %s520
      %s522 = smul.u32 %s26, 4
      %s523 = sadd.s32 %s27, 1
      %s524 = sadd.s32 %s522, %s523
      %p525 = scmp.lt.s32.totalorder %s524, 7
      %s526 = scalar_select %p525, %s524, 7
      %s527 = smul.u32 2, %s526
      %p528 = scmp.lt.s32.totalorder %s527, 15
      %s529 = scalar_select %p528, %s527, 15
      %s530 = smul.addr %s529, 2
      %s531 = smul.addr %s530, 4
      %s532 = scalar_lea.vmem %s2, %s531
      %s533 = smul.u32 %s26, 4
      %s534 = sadd.s32 %s27, 1
      %s535 = sadd.s32 %s533, %s534
      %p536 = scmp.lt.s32.totalorder %s535, 7
      %s537 = scalar_select %p536, %s535, 7
      %s538 = smul.u32 2, %s537
      %s539 = smul.u32 %s26, 4
      %s540 = sadd.s32 %s539, %s27
      %s541 = smul.u32 2, %s540
      %p542 = scmp.lt.s32.totalorder %s541, 15
      %s543 = scalar_select %p542, %s541, 15
      %s544 = smul.addr %s543, 8
      %s545 = scalar_lea.vmem %s11, %s544
      %s546 = smul.u32 %s26, 4
      %s547 = sadd.s32 %s546, %s27
      %s548 = smul.u32 2, %s547
      %v550 = vld [vmem:[%s504] sm:$0xf]
      %v551 = vld [vmem:[%s504 + $0x4] sm:$0xf]
      %v552 = vld [vmem:[%s504 + $0x8] sm:$0xf]
      %v553 = vld [vmem:[%s504 + $0xc] sm:$0xf]
      %v554 = vunpack.c.l.bf16 %v550
      %v555 = vunpack.c.l.bf16 %v551
      %v556 = vunpack.c.l.bf16 %v552
      %v557 = vunpack.c.l.bf16 %v553
      %v558 = vmax.f32 %v554, %v555
      %v559 = vmax.f32 %v556, %v557
      %562 = vrot.lane.b32.xlu0 %v558, 124
      %v563 = vpop.permute.xlu0 %562
      %564 = vrot.lane.b32.xlu0 %v559, 124
      %v565 = vpop.permute.xlu0 %564
      %v568 = vmax.f32 %v558, %v563
      %v569 = vmax.f32 %v559, %v565
      %v570 = vld [vmem:[%s518] sm:$0xf]
      %v571 = vld [vmem:[%s518 + $0x4] sm:$0xf]
      %v572 = vld [vmem:[%s518 + $0x8] sm:$0xf]
      %v573 = vld [vmem:[%s518 + $0xc] sm:$0xf]
      %v574 = vunpack.c.l.bf16 %v570
      %v575 = vunpack.c.l.bf16 %v571
      %v576 = vunpack.c.l.bf16 %v572
      %v577 = vunpack.c.l.bf16 %v573
      %v578 = vmax.f32 %v574, %v575
      %v579 = vmax.f32 %v576, %v577
      %582 = vrot.lane.b32.xlu0 %v578, 124
      %v583 = vpop.permute.xlu0 %582
      %584 = vrot.lane.b32.xlu0 %v579, 124
      %v585 = vpop.permute.xlu0 %584
      %v588 = vmax.f32 %v578, %v583
      %v589 = vmax.f32 %v579, %v585
      %v590 = vld [vmem:[%s532] sm:$0xf]
      %v591 = vld [vmem:[%s532 + $0x4] sm:$0xf]
      %v592 = vld [vmem:[%s532 + $0x8] sm:$0xf]
      %v593 = vld [vmem:[%s532 + $0xc] sm:$0xf]
      %v594 = vunpack.c.l.bf16 %v590
      %v595 = vunpack.c.l.bf16 %v591
      %v596 = vunpack.c.l.bf16 %v592
      %v597 = vunpack.c.l.bf16 %v593
      %v598 = vmax.f32 %v594, %v595
      %v599 = vmax.f32 %v596, %v597
      %602 = vrot.lane.b32.xlu0 %v598, 124
      %v603 = vpop.permute.xlu0 %602
      %604 = vrot.lane.b32.xlu0 %v599, 124
      %v605 = vpop.permute.xlu0 %604
      %v608 = vmax.f32 %v598, %v603
      %v609 = vmax.f32 %v599, %v605
      %v610 = vld [vmem:[%s6] sm:$0x1]
      %v611 = vld [vmem:[%s7] sm:$0x1]
      %p612 = scmp.gt.s32.totalorder %s27, 0
      %s613 = scalar_select %p612, 1, 0
      %s614 = scvt.s32.f32 %s613
      %p615 = scmp.lt.s32.totalorder %s27, 3
      %s616 = scalar_select %p615, 1, 0
      %s617 = scvt.s32.f32 %s616
      %v619 = vlaneseq
      %v620 = vshrl.u32 %v619, 7
      %v621 = vsub.s32 0, %v620
      %v622 = vrot.slane %v610, %v621
      %v624 = vmul.f32 %v588, %v622
      %v625 = vmul.f32 %v589, %v622
      %v627 = vlaneseq
      %v628 = vshrl.u32 %v627, 7
      %v629 = vsub.s32 0, %v628
      %v630 = vrot.slane %v611, %v629
      %v632 = vadd.f32 %v624, %v630
      %v633 = vadd.f32 %v625, %v630
      %v634 = vmax.f32 %v632, 0.0
      %v635 = vmax.f32 %v633, 0.0
      %v636 = vmul.f32 %v568, %v622
      %v637 = vmul.f32 %v569, %v622
      %v638 = vadd.f32 %v636, %v630
      %v639 = vadd.f32 %v637, %v630
      %v640 = vmax.f32 %v638, 0.0
      %v641 = vmax.f32 %v639, 0.0
      %v642 = vstv %s614
      %v643 = vmul.f32 %v640, %v642
      %v644 = vmul.f32 %v641, %v642
      %v645 = vmul.f32 %v608, %v622
      %v646 = vmul.f32 %v609, %v622
      %v647 = vadd.f32 %v645, %v630
      %v648 = vadd.f32 %v646, %v630
      %v649 = vmax.f32 %v647, 0.0
      %v650 = vmax.f32 %v648, 0.0
      %v651 = vstv %s617
      %v652 = vmul.f32 %v649, %v651
      %v653 = vmul.f32 %v650, %v651
      %v654 = vlaneseq
      %v655 = vshrl.u32 %v654, 7
      %vm656 = vcmp.ne.s32.totalorder %v655, 0
      %vm657 = vcmp.ne.s32.totalorder %v655, 7
      %v658 = vrot.slane %v643, 7
      %v659 = vrot.slane %v644, 7
      %v660 = vrot.slane %v634, 7
      %v661 = vrot.slane %v635, 7
      %v662 = vsel %vm656, 1, 0
      %vm663 = vcmp.eq.s32.totalorder %v662, 1
      %v664 = vsel %vm663, %v658, 0.0
      %v665 = vsel %vm663, %v659, 0.0
      %v666 = vsel %vm663, %v660, 0.0
      %v667 = vsel %vm663, %v661, 0.0
      %v668 = vrot.slane %v643, 1
      %v669 = vrot.slane %v644, 1
      %v670 = vrot.slane %v634, 1
      %v671 = vrot.slane %v635, 1
      %v672 = vsel %vm657, 1, 0
      %vm673 = vcmp.eq.s32.totalorder %v672, 1
      %v674 = vsel %vm673, %v668, 0.0
      %v675 = vsel %vm673, %v669, 0.0
      %v676 = vsel %vm673, %v670, 0.0
      %v677 = vsel %vm673, %v671, 0.0
      %682 = vrot.lane.b32.xlu0 %v643, 4
      %v683 = vpop.permute.xlu0 %682
      %684 = vrot.lane.b32.xlu0 %v644, 4
      %v685 = vpop.permute.xlu0 %684
      %686 = vrot.lane.b32.xlu0 %v634, 4
      %v687 = vpop.permute.xlu0 %686
      %688 = vrot.lane.b32.xlu0 %v635, 4
      %v689 = vpop.permute.xlu0 %688
      %698 = vrot.lane.b32.xlu0 %v674, 8
      %v699 = vpop.permute.xlu0 %698
      %700 = vrot.lane.b32.xlu0 %v675, 8
      %v701 = vpop.permute.xlu0 %700
      %702 = vrot.lane.b32.xlu0 %v676, 8
      %v703 = vpop.permute.xlu0 %702
      %704 = vrot.lane.b32.xlu0 %v677, 8
      %v705 = vpop.permute.xlu0 %704
      %vm710 = vcmask 31744
      %v711 = vsel %vm710, %v664, %v683
      %v712 = vsel %vm710, %v665, %v685
      %v713 = vsel %vm710, %v666, %v687
      %v714 = vsel %vm710, %v667, %v689
      %vm715 = vcmask 64512
      %v716 = vsel %vm715, %v711, %v699
      %v717 = vsel %vm715, %v712, %v701
      %v718 = vsel %vm715, %v713, %v703
      %v719 = vsel %vm715, %v714, %v705
      %v720 = vpack.c.bf16 %v717, %v716
      %v721 = vpack.c.bf16 %v719, %v718
      %v722 = vld [vmem:[%s3] sm:$0xf]
      %v723 = vld [vmem:[%s3 + $0x4] sm:$0x3]
      %v724 = vrot.slane %v652, 7
      %v725 = vsel %vm663, %v724, 0.0
      %v726 = vrot.slane %v652, 1
      %v727 = vsel %vm673, %v726, 0.0
      %729 = vrot.lane.b32.xlu0 %v652, 4
      %v730 = vpop.permute.xlu0 %729
      %733 = vrot.lane.b32.xlu0 %v727, 8
      %v734 = vpop.permute.xlu0 %733
      %v736 = vsel %vm710, %v725, %v730
      %v737 = vsel %vm715, %v736, %v734
      %v738 = vpack.c.bf16 %v718, %v717
      %v739 = vpack.c.bf16 %v737, %v719
      %s740 = scalar_lea.vmem %s3, 8
      %v741 = vld [vmem:[%s740] sm:$0xf]
      %v742 = vld [vmem:[%s740 + $0x4] sm:$0x3]
      %v745 = vunpack.c.l.b16 %v741
      %v746 = vunpack.c.l.b16 %v742
      %v747 = vpack.c.b16 %v746, %v745
      %vm748 = vcmask 97280
      %v750 = vsel %vm748, %v738, 0
      %v753 = vsel %vm748, %v739, 0
      %vm755 = vcmask 1045504
      %v757 = vsel %vm755, %v747, 0
      %759 = vmatprep.subr.bf16.mxu0 0
      %760 = vmatpush1.bf16.msra.mxu0 %v757
      %761 = vmatprep.subr.bf16.mxu0 0
      %762 = vmatpush1.bf16.msra.mxu0 0
      %763 = vmatprep.subr.bf16.mxu0 0
      %764 = vmatpush1.bf16.msra.mxu0 0
      %765 = vmatprep.subr.bf16.mxu0 0
      %766 = vmatpush1.bf16.msra.mxu0 0
      %767 = vmatprep.subr.bf16.mxu0 0
      %768 = vmatpush1.bf16.msra.mxu0 0
      %769 = vmatprep.subr.bf16.mxu0 0
      %770 = vmatpush1.bf16.msra.mxu0 0
      %771 = vmatprep.subr.bf16.mxu0 0
      %772 = vmatpush1.bf16.msra.mxu0 0
      %773 = vmatprep.subr.bf16.mxu0 0
      %774 = vmatpush1.bf16.msra.mxu0 0
      %775 = vmatprep.subr.bf16.mxu0 0
      %776 = vmatpush1.bf16.msra.mxu0 0
      %777 = vmatprep.subr.bf16.mxu0 0
      %778 = vmatpush1.bf16.msra.mxu0 0
      %779 = vmatprep.subr.bf16.mxu0 0
      %780 = vmatpush1.bf16.msra.mxu0 0
      %781 = vmatprep.subr.bf16.mxu0 0
      %782 = vmatpush1.bf16.msra.mxu0 0
      %783 = vmatprep.subr.bf16.mxu0 0
      %784 = vmatpush1.bf16.msra.mxu0 0
      %785 = vmatprep.subr.bf16.mxu0 0
      %786 = vmatpush1.bf16.msra.mxu0 0
      %787 = vmatprep.subr.bf16.mxu0 0
      %788 = vmatpush1.bf16.msra.mxu0 0
      %789 = vmatprep.subr.bf16.mxu0 0
      %790 = vmatpush1.bf16.msra.mxu0 0
      %791 = vmatprep.mubr.bf16.mxu0 0
      %792 = vmatmul.mubr.bf16.gmra.mrb[0].mxu0 %v750
      %v793 = vpop.f32.mrb[0].mxu0
      %v794 = vadd.f32 0.0, %v793
      %v795 = vpop.f32.mrb[0].mxu0
      %v796 = vpop.f32.mrb[0].mxu0
      %v797 = vadd.f32 0.0, %v796
      %v798 = vpop.f32.mrb[0].mxu0
      %799 = vmatprep.mubr.bf16.mxu0 0
      %800 = vmatmul.mubr.bf16.gmra.mrb[0].mxu0 %v753
      %v801 = vpop.f32.mrb[0].mxu0
      %v802 = vadd.f32 0.0, %v801
      %v803 = vpop.f32.mrb[0].mxu0
      %v804 = vpop.f32.mrb[0].mxu0
      %v805 = vadd.f32 0.0, %v804
      %v806 = vpop.f32.mrb[0].mxu0
      %807 = vdwg.mxu0
      %v810 = vunpack.c.l.b16 %v722
      %v811 = vunpack.c.l.b16 %v723
      %v812 = vpack.c.b16 %v811, %v810
      %v814 = vsel %vm748, %v720, 0
      %v817 = vsel %vm748, %v721, 0
      %v820 = vsel %vm755, %v812, 0
      %822 = vmatprep.subr.bf16.mxu0 0
      %823 = vmatpush1.bf16.msra.mxu0 %v820
      %824 = vmatprep.subr.bf16.mxu0 0
      %825 = vmatpush1.bf16.msra.mxu0 0
      %826 = vmatprep.subr.bf16.mxu0 0
      %827 = vmatpush1.bf16.msra.mxu0 0
      %828 = vmatprep.subr.bf16.mxu0 0
      %829 = vmatpush1.bf16.msra.mxu0 0
      %830 = vmatprep.subr.bf16.mxu0 0
      %831 = vmatpush1.bf16.msra.mxu0 0
      %832 = vmatprep.subr.bf16.mxu0 0
      %833 = vmatpush1.bf16.msra.mxu0 0
      %834 = vmatprep.subr.bf16.mxu0 0
      %835 = vmatpush1.bf16.msra.mxu0 0
      %836 = vmatprep.subr.bf16.mxu0 0
      %837 = vmatpush1.bf16.msra.mxu0 0
      %838 = vmatprep.subr.bf16.mxu0 0
      %839 = vmatpush1.bf16.msra.mxu0 0
      %840 = vmatprep.subr.bf16.mxu0 0
      %841 = vmatpush1.bf16.msra.mxu0 0
      %842 = vmatprep.subr.bf16.mxu0 0
      %843 = vmatpush1.bf16.msra.mxu0 0
      %844 = vmatprep.subr.bf16.mxu0 0
      %845 = vmatpush1.bf16.msra.mxu0 0
      %846 = vmatprep.subr.bf16.mxu0 0
      %847 = vmatpush1.bf16.msra.mxu0 0
      %848 = vmatprep.subr.bf16.mxu0 0
      %849 = vmatpush1.bf16.msra.mxu0 0
      %850 = vmatprep.subr.bf16.mxu0 0
      %851 = vmatpush1.bf16.msra.mxu0 0
      %852 = vmatprep.subr.bf16.mxu0 0
      %853 = vmatpush1.bf16.msra.mxu0 0
      %854 = vmatprep.mubr.bf16.mxu0 0
      %855 = vmatmul.mubr.bf16.gmra.mrb[0].mxu0 %v814
      %v856 = vpop.f32.mrb[0].mxu0
      %v857 = vadd.f32 %v794, %v856
      %v858 = vpop.f32.mrb[0].mxu0
      %v859 = vpop.f32.mrb[0].mxu0
      %v860 = vadd.f32 %v797, %v859
      %v861 = vpop.f32.mrb[0].mxu0
      %862 = vmatprep.mubr.bf16.mxu0 0
      %863 = vmatmul.mubr.bf16.gmra.mrb[0].mxu0 %v817
      %v864 = vpop.f32.mrb[0].mxu0
      %v865 = vadd.f32 %v802, %v864
      %v866 = vpop.f32.mrb[0].mxu0
      %v867 = vpop.f32.mrb[0].mxu0
      %v868 = vadd.f32 %v805, %v867
      %v869 = vpop.f32.mrb[0].mxu0
      %870 = vdwg.mxu0
      %v871 = vrot.slane %v653, 7
      %v872 = vsel %vm663, %v871, 0.0
      %v873 = vrot.slane %v653, 1
      %v874 = vsel %vm673, %v873, 0.0
      %876 = vrot.lane.b32.xlu0 %v653, 4
      %v877 = vpop.permute.xlu0 %876
      %880 = vrot.lane.b32.xlu0 %v874, 8
      %v881 = vpop.permute.xlu0 %880
      %v883 = vsel %vm710, %v872, %v877
      %v884 = vsel %vm715, %v883, %v881
      %v885 = vpack.c.bf16 %v884, %v737
      %s886 = scalar_lea.vmem %s3, 16
      %v887 = vld [vmem:[%s886] sm:$0xf]
      %v888 = vld [vmem:[%s886 + $0x4] sm:$0x3]
      %v891 = vunpack.c.l.b16 %v887
      %v892 = vunpack.c.l.b16 %v888
      %v893 = vpack.c.b16 %v892, %v891
      %v895 = vsel %vm748, %v885, 0
      %v898 = vsel %vm755, %v893, 0
      %900 = vmatprep.subr.bf16.mxu0 0
      %901 = vmatpush1.bf16.msra.mxu0 %v898
      %902 = vmatprep.subr.bf16.mxu0 0
      %903 = vmatpush1.bf16.msra.mxu0 0
      %904 = vmatprep.subr.bf16.mxu0 0
      %905 = vmatpush1.bf16.msra.mxu0 0
      %906 = vmatprep.subr.bf16.mxu0 0
      %907 = vmatpush1.bf16.msra.mxu0 0
      %908 = vmatprep.subr.bf16.mxu0 0
      %909 = vmatpush1.bf16.msra.mxu0 0
      %910 = vmatprep.subr.bf16.mxu0 0
      %911 = vmatpush1.bf16.msra.mxu0 0
      %912 = vmatprep.subr.bf16.mxu0 0
      %913 = vmatpush1.bf16.msra.mxu0 0
      %914 = vmatprep.subr.bf16.mxu0 0
      %915 = vmatpush1.bf16.msra.mxu0 0
      %916 = vmatprep.subr.bf16.mxu0 0
      %917 = vmatpush1.bf16.msra.mxu0 0
      %918 = vmatprep.subr.bf16.mxu0 0
      %919 = vmatpush1.bf16.msra.mxu0 0
      %920 = vmatprep.subr.bf16.mxu0 0
      %921 = vmatpush1.bf16.msra.mxu0 0
      %922 = vmatprep.subr.bf16.mxu0 0
      %923 = vmatpush1.bf16.msra.mxu0 0
      %924 = vmatprep.subr.bf16.mxu0 0
      %925 = vmatpush1.bf16.msra.mxu0 0
      %926 = vmatprep.subr.bf16.mxu0 0
      %927 = vmatpush1.bf16.msra.mxu0 0
      %928 = vmatprep.subr.bf16.mxu0 0
      %929 = vmatpush1.bf16.msra.mxu0 0
      %930 = vmatprep.subr.bf16.mxu0 0
      %931 = vmatpush1.bf16.msra.mxu0 0
      %932 = vmatprep.mubr.bf16.mxu0 0
      %933 = vmatmul.mubr.bf16.gmra.mrb[0].mxu0 %v817
      %v934 = vpop.f32.mrb[0].mxu0
      %v935 = vadd.f32 0.0, %v934
      %v936 = vpop.f32.mrb[0].mxu0
      %v937 = vpop.f32.mrb[0].mxu0
      %v938 = vadd.f32 0.0, %v937
      %v939 = vpop.f32.mrb[0].mxu0
      %940 = vmatprep.mubr.bf16.mxu0 0
      %941 = vmatmul.mubr.bf16.gmra.mrb[0].mxu0 %v895
      %v942 = vpop.f32.mrb[0].mxu0
      %v943 = vadd.f32 0.0, %v942
      %v944 = vpop.f32.mrb[0].mxu0
      %v945 = vpop.f32.mrb[0].mxu0
      %v946 = vadd.f32 0.0, %v945
      %v947 = vpop.f32.mrb[0].mxu0
      %948 = vdwg.mxu0
      %v949 = vadd.f32 %v857, %v935
      %v950 = vadd.f32 %v860, %v938
      %v951 = vadd.f32 %v865, %v943
      %v952 = vadd.f32 %v868, %v946
      %v953 = vld [vmem:[%s8] sm:$0x1]
      %v955 = vlaneseq
      %v956 = vshrl.u32 %v955, 7
      %v957 = vsub.s32 0, %v956
      %v958 = vrot.slane %v953, %v957
      %v960 = vmul.f32 %v949, %v958
      %v961 = vmul.f32 %v950, %v958
      %v962 = vmul.f32 %v951, %v958
      %v963 = vmul.f32 %v952, %v958
      %v964 = vld [vmem:[%s9] sm:$0x1]
      %v966 = vlaneseq
      %v967 = vshrl.u32 %v966, 7
      %v968 = vsub.s32 0, %v967
      %v969 = vrot.slane %v964, %v968
      %v971 = vadd.f32 %v960, %v969
      %v972 = vadd.f32 %v961, %v969
      %v973 = vadd.f32 %v962, %v969
      %v974 = vadd.f32 %v963, %v969
      %v975 = vmax.f32 %v971, 0.0
      %v976 = vmax.f32 %v972, 0.0
      %v977 = vmax.f32 %v973, 0.0
      %v978 = vmax.f32 %v974, 0.0
      %v979 = vstv %s613
      %vm980 = vcmp.eq.s32.totalorder %v979, 1
      %v981 = vstv %s616
      %vm982 = vcmp.eq.s32.totalorder %v981, 1
      %v983 = vsel %vm980, 1, 0
      %v984 = vsel %vm982, 1, 0
      %vm985 = vcmp.eq.s32.totalorder %v983, 1
      %vm986 = vcmp.eq.s32.totalorder %v984, 1
      %v987 = vsel %vm985, %v975, 0.0
      %v988 = vsel 1, %v976, 0.0
      %v989 = vsel 1, %v977, 0.0
      %v990 = vsel %vm986, %v978, 0.0
      %v991 = vrot.slane %v987, 7
      %v992 = vrot.slane %v988, 7
      %v993 = vsel %vm663, %v991, 0.0
      %v994 = vsel %vm663, %v992, 0.0
      %v995 = vrot.slane %v987, 1
      %v996 = vrot.slane %v988, 1
      %v997 = vsel %vm673, %v995, 0.0
      %v998 = vsel %vm673, %v996, 0.0
      %1001 = vrot.lane.b32.xlu0 %v987, 8
      %v1002 = vpop.permute.xlu0 %1001
      %1003 = vrot.lane.b32.xlu0 %v988, 8
      %v1004 = vpop.permute.xlu0 %1003
      %1009 = vrot.lane.b32.xlu0 %v997, 16
      %v1010 = vpop.permute.xlu0 %1009
      %1011 = vrot.lane.b32.xlu0 %v998, 16
      %v1012 = vpop.permute.xlu0 %1011
      %v1015 = vsel %vm715, %v993, %v1002
      %v1016 = vsel %vm715, %v994, %v1004
      %vm1017 = vcmask 130048
      %v1018 = vsel %vm1017, %v1015, %v1010
      %v1019 = vsel %vm1017, %v1016, %v1012
      %v1020 = vpack.c.bf16 %v1019, %v1018
      %v1021 = vld [vmem:[%s4] sm:$0xf]
      %v1022 = vld [vmem:[%s4 + $0x4] sm:$0xf]
      %v1023 = vld [vmem:[%s4 + $0x8] sm:$0xf]
      %v1024 = vrot.slane %v989, 7
      %v1025 = vsel %vm663, %v1024, 0.0
      %v1026 = vrot.slane %v989, 1
      %v1027 = vsel %vm673, %v1026, 0.0
      %1029 = vrot.lane.b32.xlu0 %v989, 8
      %v1030 = vpop.permute.xlu0 %1029
      %1033 = vrot.lane.b32.xlu0 %v1027, 16
      %v1034 = vpop.permute.xlu0 %1033
      %v1036 = vsel %vm715, %v1025, %v1030
      %v1037 = vsel %vm1017, %v1036, %v1034
      %v1038 = vpack.c.bf16 %v1037, %v1019
      %s1039 = scalar_lea.vmem %s4, 12
      %v1040 = vld [vmem:[%s1039] sm:$0xf]
      %v1041 = vld [vmem:[%s1039 + $0x4] sm:$0xf]
      %v1042 = vld [vmem:[%s1039 + $0x8] sm:$0xf]
      %v1046 = vunpack.c.l.b16 %v1040
      %v1047 = vunpack.c.l.b16 %v1041
      %v1048 = vunpack.c.l.b16 %v1042
      %v1049 = vpack.c.b16 %v1047, %v1046
      %v1050 = vpack.c.b16 %v1048, %v1048
      %vm1052 = vcmask 195584
      %v1054 = vsel %vm1052, %v1038, 0
      %vm1056 = vcmask 1043456
      %v1058 = vsel %vm1056, %v1050, 0
      %1060 = vmatprep.subr.bf16.mxu0 0
      %1061 = vmatpush1.bf16.msra.mxu0 %v1049
      %1062 = vmatprep.subr.bf16.mxu0 0
      %1063 = vmatpush1.bf16.msra.mxu0 %v1058
      %1064 = vmatprep.subr.bf16.mxu0 0
      %1065 = vmatpush1.bf16.msra.mxu0 0
      %1066 = vmatprep.subr.bf16.mxu0 0
      %1067 = vmatpush1.bf16.msra.mxu0 0
      %1068 = vmatprep.subr.bf16.mxu0 0
      %1069 = vmatpush1.bf16.msra.mxu0 0
      %1070 = vmatprep.subr.bf16.mxu0 0
      %1071 = vmatpush1.bf16.msra.mxu0 0
      %1072 = vmatprep.subr.bf16.mxu0 0
      %1073 = vmatpush1.bf16.msra.mxu0 0
      %1074 = vmatprep.subr.bf16.mxu0 0
      %1075 = vmatpush1.bf16.msra.mxu0 0
      %1076 = vmatprep.subr.bf16.mxu0 0
      %1077 = vmatpush1.bf16.msra.mxu0 0
      %1078 = vmatprep.subr.bf16.mxu0 0
      %1079 = vmatpush1.bf16.msra.mxu0 0
      %1080 = vmatprep.subr.bf16.mxu0 0
      %1081 = vmatpush1.bf16.msra.mxu0 0
      %1082 = vmatprep.subr.bf16.mxu0 0
      %1083 = vmatpush1.bf16.msra.mxu0 0
      %1084 = vmatprep.subr.bf16.mxu0 0
      %1085 = vmatpush1.bf16.msra.mxu0 0
      %1086 = vmatprep.subr.bf16.mxu0 0
      %1087 = vmatpush1.bf16.msra.mxu0 0
      %1088 = vmatprep.subr.bf16.mxu0 0
      %1089 = vmatpush1.bf16.msra.mxu0 0
      %1090 = vmatprep.subr.bf16.mxu0 0
      %1091 = vmatpush1.bf16.msra.mxu0 0
      %1092 = vmatprep.mubr.bf16.mxu0 0
      %1093 = vmatmul.mubr.bf16.gmra.mrb[0].mxu0 %v1054
      %v1094 = vpop.f32.mrb[0].mxu0
      %v1095 = vadd.f32 0.0, %v1094
      %v1096 = vpop.f32.mrb[0].mxu0
      %v1097 = vpop.f32.mrb[0].mxu0
      %v1098 = vadd.f32 0.0, %v1097
      %v1099 = vpop.f32.mrb[0].mxu0
      %1100 = vdwg.mxu0
      %v1104 = vunpack.c.l.b16 %v1021
      %v1105 = vunpack.c.l.b16 %v1022
      %v1106 = vunpack.c.l.b16 %v1023
      %v1107 = vpack.c.b16 %v1105, %v1104
      %v1108 = vpack.c.b16 %v1106, %v1106
      %v1111 = vsel %vm1052, %v1020, 0
      %v1114 = vsel %vm1056, %v1108, 0
      %1116 = vmatprep.subr.bf16.mxu0 0
      %1117 = vmatpush1.bf16.msra.mxu0 %v1107
      %1118 = vmatprep.subr.bf16.mxu0 0
      %1119 = vmatpush1.bf16.msra.mxu0 %v1114
      %1120 = vmatprep.subr.bf16.mxu0 0
      %1121 = vmatpush1.bf16.msra.mxu0 0
      %1122 = vmatprep.subr.bf16.mxu0 0
      %1123 = vmatpush1.bf16.msra.mxu0 0
      %1124 = vmatprep.subr.bf16.mxu0 0
      %1125 = vmatpush1.bf16.msra.mxu0 0
      %1126 = vmatprep.subr.bf16.mxu0 0
      %1127 = vmatpush1.bf16.msra.mxu0 0
      %1128 = vmatprep.subr.bf16.mxu0 0
      %1129 = vmatpush1.bf16.msra.mxu0 0
      %1130 = vmatprep.subr.bf16.mxu0 0
      %1131 = vmatpush1.bf16.msra.mxu0 0
      %1132 = vmatprep.subr.bf16.mxu0 0
      %1133 = vmatpush1.bf16.msra.mxu0 0
      %1134 = vmatprep.subr.bf16.mxu0 0
      %1135 = vmatpush1.bf16.msra.mxu0 0
      %1136 = vmatprep.subr.bf16.mxu0 0
      %1137 = vmatpush1.bf16.msra.mxu0 0
      %1138 = vmatprep.subr.bf16.mxu0 0
      %1139 = vmatpush1.bf16.msra.mxu0 0
      %1140 = vmatprep.subr.bf16.mxu0 0
      %1141 = vmatpush1.bf16.msra.mxu0 0
      %1142 = vmatprep.subr.bf16.mxu0 0
      %1143 = vmatpush1.bf16.msra.mxu0 0
      %1144 = vmatprep.subr.bf16.mxu0 0
      %1145 = vmatpush1.bf16.msra.mxu0 0
      %1146 = vmatprep.subr.bf16.mxu0 0
      %1147 = vmatpush1.bf16.msra.mxu0 0
      %1148 = vmatprep.mubr.bf16.mxu0 0
      %1149 = vmatmul.mubr.bf16.gmra.mrb[0].mxu0 %v1111
      %v1150 = vpop.f32.mrb[0].mxu0
      %v1151 = vadd.f32 %v1095, %v1150
      %v1152 = vpop.f32.mrb[0].mxu0
      %v1153 = vpop.f32.mrb[0].mxu0
      %v1154 = vadd.f32 %v1098, %v1153
      %v1155 = vpop.f32.mrb[0].mxu0
      %1156 = vdwg.mxu0
      %v1157 = vrot.slane %v990, 7
      %v1158 = vsel %vm663, %v1157, 0.0
      %v1159 = vrot.slane %v990, 1
      %v1160 = vsel %vm673, %v1159, 0.0
      %1162 = vrot.lane.b32.xlu0 %v990, 8
      %v1163 = vpop.permute.xlu0 %1162
      %1166 = vrot.lane.b32.xlu0 %v1160, 16
      %v1167 = vpop.permute.xlu0 %1166
      %v1169 = vsel %vm715, %v1158, %v1163
      %v1170 = vsel %vm1017, %v1169, %v1167
      %v1171 = vpack.c.bf16 %v1170, %v1037
      %s1172 = scalar_lea.vmem %s4, 24
      %v1173 = vld [vmem:[%s1172] sm:$0xf]
      %v1174 = vld [vmem:[%s1172 + $0x4] sm:$0xf]
      %v1175 = vld [vmem:[%s1172 + $0x8] sm:$0xf]
      %v1179 = vunpack.c.l.b16 %v1173
      %v1180 = vunpack.c.l.b16 %v1174
      %v1181 = vunpack.c.l.b16 %v1175
      %v1182 = vpack.c.b16 %v1180, %v1179
      %v1183 = vpack.c.b16 %v1181, %v1181
      %v1186 = vsel %vm1052, %v1171, 0
      %v1189 = vsel %vm1056, %v1183, 0
      %1191 = vmatprep.subr.bf16.mxu0 0
      %1192 = vmatpush1.bf16.msra.mxu0 %v1182
      %1193 = vmatprep.subr.bf16.mxu0 0
      %1194 = vmatpush1.bf16.msra.mxu0 %v1189
      %1195 = vmatprep.subr.bf16.mxu0 0
      %1196 = vmatpush1.bf16.msra.mxu0 0
      %1197 = vmatprep.subr.bf16.mxu0 0
      %1198 = vmatpush1.bf16.msra.mxu0 0
      %1199 = vmatprep.subr.bf16.mxu0 0
      %1200 = vmatpush1.bf16.msra.mxu0 0
      %1201 = vmatprep.subr.bf16.mxu0 0
      %1202 = vmatpush1.bf16.msra.mxu0 0
      %1203 = vmatprep.subr.bf16.mxu0 0
      %1204 = vmatpush1.bf16.msra.mxu0 0
      %1205 = vmatprep.subr.bf16.mxu0 0
      %1206 = vmatpush1.bf16.msra.mxu0 0
      %1207 = vmatprep.subr.bf16.mxu0 0
      %1208 = vmatpush1.bf16.msra.mxu0 0
      %1209 = vmatprep.subr.bf16.mxu0 0
      %1210 = vmatpush1.bf16.msra.mxu0 0
      %1211 = vmatprep.subr.bf16.mxu0 0
      %1212 = vmatpush1.bf16.msra.mxu0 0
      %1213 = vmatprep.subr.bf16.mxu0 0
      %1214 = vmatpush1.bf16.msra.mxu0 0
      %1215 = vmatprep.subr.bf16.mxu0 0
      %1216 = vmatpush1.bf16.msra.mxu0 0
      %1217 = vmatprep.subr.bf16.mxu0 0
      %1218 = vmatpush1.bf16.msra.mxu0 0
      %1219 = vmatprep.subr.bf16.mxu0 0
      %1220 = vmatpush1.bf16.msra.mxu0 0
      %1221 = vmatprep.subr.bf16.mxu0 0
      %1222 = vmatpush1.bf16.msra.mxu0 0
      %1223 = vmatprep.mubr.bf16.mxu0 0
      %1224 = vmatmul.mubr.bf16.gmra.mrb[0].mxu0 %v1186
      %v1225 = vpop.f32.mrb[0].mxu0
      %v1226 = vadd.f32 0.0, %v1225
      %v1227 = vpop.f32.mrb[0].mxu0
      %v1228 = vpop.f32.mrb[0].mxu0
      %v1229 = vadd.f32 0.0, %v1228
      %v1230 = vpop.f32.mrb[0].mxu0
      %1231 = vdwg.mxu0
      %v1232 = vadd.f32 %v1151, %v1226
      %v1233 = vadd.f32 %v1154, %v1229
      %v1234 = vpack.c.bf16 %v589, %v588
      %v1235 = vld [vmem:[%s5] sm:$0x3]
      %v1236 = vld [vmem:[%s10] sm:$0x1]
      %v1238 = vlaneseq
      %v1239 = vshrl.u32 %v1238, 7
      %v1240 = vsub.s32 0, %v1239
      %v1241 = vrot.slane %v1236, %v1240
      %v1244 = vsel %vm710, %v1234, 0
      %vm1246 = vcmask 1041408
      %v1248 = vsel %vm1246, %v1235, 0
      %1250 = vmatprep.subr.bf16.mxu0 0
      %1251 = vmatpush1.bf16.msra.mxu0 %v1248
      %1252 = vmatprep.subr.bf16.mxu0 0
      %1253 = vmatpush1.bf16.msra.mxu0 0
      %1254 = vmatprep.subr.bf16.mxu0 0
      %1255 = vmatpush1.bf16.msra.mxu0 0
      %1256 = vmatprep.subr.bf16.mxu0 0
      %1257 = vmatpush1.bf16.msra.mxu0 0
      %1258 = vmatprep.subr.bf16.mxu0 0
      %1259 = vmatpush1.bf16.msra.mxu0 0
      %1260 = vmatprep.subr.bf16.mxu0 0
      %1261 = vmatpush1.bf16.msra.mxu0 0
      %1262 = vmatprep.subr.bf16.mxu0 0
      %1263 = vmatpush1.bf16.msra.mxu0 0
      %1264 = vmatprep.subr.bf16.mxu0 0
      %1265 = vmatpush1.bf16.msra.mxu0 0
      %1266 = vmatprep.subr.bf16.mxu0 0
      %1267 = vmatpush1.bf16.msra.mxu0 0
      %1268 = vmatprep.subr.bf16.mxu0 0
      %1269 = vmatpush1.bf16.msra.mxu0 0
      %1270 = vmatprep.subr.bf16.mxu0 0
      %1271 = vmatpush1.bf16.msra.mxu0 0
      %1272 = vmatprep.subr.bf16.mxu0 0
      %1273 = vmatpush1.bf16.msra.mxu0 0
      %1274 = vmatprep.subr.bf16.mxu0 0
      %1275 = vmatpush1.bf16.msra.mxu0 0
      %1276 = vmatprep.subr.bf16.mxu0 0
      %1277 = vmatpush1.bf16.msra.mxu0 0
      %1278 = vmatprep.subr.bf16.mxu0 0
      %1279 = vmatpush1.bf16.msra.mxu0 0
      %1280 = vmatprep.subr.bf16.mxu0 0
      %1281 = vmatpush1.bf16.msra.mxu0 0
      %1282 = vmatprep.mubr.bf16.mxu0 0
      %1283 = vmatmul.mubr.bf16.gmra.mrb[0].mxu0 %v1244
      %v1284 = vpop.f32.mrb[0].mxu0
      %v1285 = vadd.f32 %v1241, %v1284
      %v1286 = vpop.f32.mrb[0].mxu0
      %v1287 = vpop.f32.mrb[0].mxu0
      %v1288 = vadd.f32 %v1241, %v1287
      %v1289 = vpop.f32.mrb[0].mxu0
      %1290 = vdwg.mxu0
      %v1291 = vadd.f32 %v1232, %v1285
      %v1292 = vadd.f32 %v1233, %v1288
      %1293 = vst.msk [vmem:[%s545] sm:$0xff] %vm715, %v1291
      %1294 = vst.msk [vmem:[%s545 + $0x8] sm:$0xff] %vm715, %v1292
      %s1295 = smul.u32 %s26, 4
      %s1296 = sadd.s32 %s1295, %s27
      %s1297 = smul.u32 2, %s1296
      %p1298 = scmp.lt.s32.totalorder %s1297, 15
      %s1299 = scalar_select %p1298, %s1297, 15
      %s1300 = smul.addr %s1299, 8
      %s1301 = scalar_lea.vmem %s11, %s1300
      // Predicated region
      $region65: #{tpu_custom_call.1} parent=63 // pred_check
        %p1302 = pneg %p326
      $region66: #{tpu_custom_call.1} parent=63 // pred_check_branch
        %1304 = sbr.rel (%p1302) target = $region68
      $region67: #{tpu_custom_call.1} parent=63 // pred_region
        %s1305 = smul.u32 %s26, 4
        %s1306 = sadd.s32 %s1305, %s27
        %s1307 = smul.u32 2, %s1306
      $region68: #{tpu_custom_call.1} parent=63 // pred_fallthru
        _
    $region64: #{tpu_custom_call.1} parent=5 // pred_fallthru
      _
    %p1308 = scmp.le.s32.totalorder 2, %s17
    // Predicated region
    $region69: #{tpu_custom_call.1} parent=5 // pred_check
      %p1309 = pneg %p1308
    $region70: #{tpu_custom_call.1} parent=5 // pred_check_branch
      %1311 = sbr.rel (%p1309) target = $region72
    $region71: #{tpu_custom_call.1} parent=5 // pred_region
      %s1312 = ssub.s32 %s17, 2
      // Predicated region
      $region73: #{tpu_custom_call.1} parent=71 // pred_check
        %p1313 = pneg %p332
      $region74: #{tpu_custom_call.1} parent=71 // pred_check_branch
        %1315 = sbr.rel (%p1313) target = $region76
      $region75: #{tpu_custom_call.1} parent=71 // pred_region
        %s1316 = smul.u32 %s28, 4
        %s1317 = sadd.s32 %s1316, %s29
        %s1318 = smul.u32 2, %s1317
        %p1319 = scmp.lt.s32.totalorder %s1318, 15
        %s1320 = scalar_select %p1319, %s1318, 15
        %s1321 = smul.addr %s1320, 8
        %s1322 = scalar_lea.vmem %s11, %s1321
      $region76: #{tpu_custom_call.1} parent=71 // pred_fallthru
        _
    $region72: #{tpu_custom_call.1} parent=5 // pred_fallthru
      _
  $region6: #{tpu_custom_call.1} parent=0 // loop_footer
    %s21 = sadd.s32 1, %s17
  $region7: #{tpu_custom_call.1} parent=0 // loop_footer_branch
    %16 = sbr.rel target = $region3
  $region8: #{tpu_custom_call.1} parent=0 // loop_exit
    _

</llo_original>
